<compile_context>
chip_gen: v7x
topology: tpu7x:2x2x1
jax: 0.10.0
libtpu: 0.0.40
codegen_flags: <defaults>
</compile_context>

<pallas_src>
import functools

import jax
import jax.numpy as jnp
from jax import lax
from jax.experimental import pallas as pl
from jax.experimental.pallas import tpu as pltpu


# ---------------------------------------------------------------------------
# GELU variants
# ---------------------------------------------------------------------------
def _erf(x):
    # Abramowitz & Stegun 7.1.26 (|err| < 1.5e-7).  Kept exact (true divide) since this path
    # only exists for bit-parity with torch's erf GELU; the default tanh path is the fast,
    # EUP-offloaded one.
    a1, a2, a3, a4, a5 = 0.254829592, -0.284496736, 1.421413741, -1.453152027, 1.061405429
    p = 0.3275911
    s = jnp.sign(x)
    ax = jnp.abs(x)
    t = 1.0 / (1.0 + p * ax)
    poly = ((((a5 * t + a4) * t + a3) * t + a2) * t + a1) * t
    return s * (1.0 - poly * jnp.exp(-ax * ax))


def _gelu_exact(x):
    return 0.5 * x * (1.0 + _erf(x * 0.7071067811865476))


def _gelu_tanh(x):
    # tanh approximation: a few VALU muls + 1 EUP tanh per element; |err vs erf GELU| < ~1e-3.
    return 0.5 * x * (1.0 + jnp.tanh(0.7978845608028654 * (x + 0.044715 * x * x * x)))


# ---------------------------------------------------------------------------
# Kernel
# ---------------------------------------------------------------------------
def _mlp_kernel(*refs, n_linear, compute_dtype, gelu_fn):
    # refs = (x_ref, w1, b1, ..., wL, bL, out_ref)
    x_ref, out_ref = refs[0], refs[-1]
    wb = refs[1:-1]

    # Layer 0: x block is natural-layout (tile_m, in_dim_p).  Contract on the LAST dims of
    # both operands so the MXU absorbs the transpose and the result lands feature-on-sublane:
    #   (dout_p, din_p) x (tile_m, din_p) -> (dout_p, tile_m), f32 accumulation.
    w0 = wb[0][...]
    b0 = wb[1][...].astype(jnp.float32)
    acc = lax.dot_general(w0, x_ref[...], (((1,), (1,)), ((), ())),
                          preferred_element_type=jnp.float32)
    acc = gelu_fn(acc + b0)
    # Only downcast when the activation feeds another MXU matmul.
    h = acc.astype(compute_dtype) if n_linear > 2 else acc

    # Hidden layers 1..n_linear-2: (dout_p, din_p) @ (din_p, tile_m) on the MXU.
    for layer in range(1, n_linear - 1):
        w = wb[2 * layer][...]
        b = wb[2 * layer + 1][...].astype(jnp.float32)
        acc = jnp.dot(w, h, preferred_element_type=jnp.float32)
        acc = gelu_fn(acc + b)
        h = acc.astype(compute_dtype) if layer < n_linear - 2 else acc

    # Final (hidden -> 1) projection: VPU broadcast-multiply + sublane reduce.  The MXU stays
    # free and the result is already a lane-dense (1, tile_m) row.
    w_last = wb[-2][...].astype(jnp.float32)   # (hid_p, 1)
    b_last = wb[-1][...].astype(jnp.float32)   # (1, 1)
    y = jnp.sum(h.astype(jnp.float32) * w_last, axis=0, keepdims=True) + b_last
    out_ref[...] = y.astype(out_ref.dtype)


# ---------------------------------------------------------------------------
# Parameters (same layout/init as torch.nn.Linear: W is (out_features, in_features))
# ---------------------------------------------------------------------------
def init_params(key, in_dim, hidden_dim, n_layers, dtype=jnp.float32):
    assert n_layers > 1, "Expected at least 1 hidden layer"
    dims = [(hidden_dim, in_dim)]
    dims += [(hidden_dim, hidden_dim)] * (n_layers - 1)
    dims += [(1, hidden_dim)]
    params = []
    for (dout, din) in dims:
        key, kw, kb = jax.random.split(key, 3)
        bound = float(din) ** -0.5
        w = jax.random.uniform(kw, (dout, din), dtype, -bound, bound)
        b = jax.random.uniform(kb, (dout,), dtype, -bound, bound)
        params.append((w, b))
    return params


def _round_up(x, m):
    return (x + m - 1) // m * m


# ---------------------------------------------------------------------------
# Wrapper
# ---------------------------------------------------------------------------
def classification_head(x, params, *, tile_m=1024, gelu_approximate=True,
                        mxu_dtype=None, vmem_limit_bytes=None):
    """x: (..., in_dim) -> (..., 1). Whole MLP runs in one Pallas TPU kernel."""
    orig_lead = x.shape[:-1]
    in_dim = x.shape[-1]
    n_linear = len(params)
    assert n_linear >= 2
    out_dtype = x.dtype

    # bf16 MXU path by default for f32 inputs (all TPU gens are bf16-native on the MXU).
    if mxu_dtype is None:
        mxu_dtype = jnp.bfloat16 if x.dtype == jnp.float32 else x.dtype
    mxu_dtype = jnp.dtype(mxu_dtype)

    x2 = x.reshape(-1, in_dim)
    n_rows = x2.shape[0]

    # Rows map to the lane axis of the output (and sublanes of the x block), so tile_m must
    # be a multiple of 128.  When the problem would fit in one tile but spans >= 256 rows,
    # split it so the ("parallel",) grid has >= 2 steps and both v7x TensorCores get work.
    tile_m = _round_up(max(tile_m, 128), 128)
    n_ceil = _round_up(n_rows, 128)
    if tile_m >= n_ceil and n_ceil >= 256:
        tile_m = _round_up((n_ceil + 1) // 2, 128)
    tile_m = min(tile_m, n_ceil)
    n_padded = _round_up(n_rows, tile_m)
    in_dim_p = _round_up(in_dim, 128)

    # Pad rows/features to the tile grid and cast once to the MXU dtype.  No transpose pass:
    # the kernel loads natural-layout blocks and the first matmul absorbs the transpose.
    x_in = x2.astype(mxu_dtype)
    row_pad, col_pad = n_padded - n_rows, in_dim_p - in_dim
    if row_pad or col_pad:
        x_in = jnp.pad(x_in, ((0, row_pad), (0, col_pad)))

    flat = []
    max_hidden_p = 128
    for li, (w, b) in enumerate(params):
        dout, din = w.shape
        if li < n_linear - 1:
            dout_p, din_p = _round_up(dout, 128), _round_up(din, 128)
            max_hidden_p = max(max_hidden_p, dout_p)
            # Hidden-layer weights feed the MXU -> store in mxu_dtype; biases stay f32
            # (they are only used in the f32 epilogue).
            w_p = jnp.pad(w.astype(mxu_dtype), ((0, dout_p - dout), (0, din_p - din)))
            b_p = jnp.pad(b.astype(jnp.float32), (0, dout_p - dout)).reshape(dout_p, 1)
        else:
            assert dout == 1, "final projection must map hidden -> 1"
            din_p = _round_up(din, 128)
            w_p = jnp.pad(w.astype(jnp.float32).T, ((0, din_p - din), (0, 0)))  # (hid_p, 1)
            b_p = b.astype(jnp.float32).reshape(1, 1)
        flat += [w_p, b_p]

    # Auto-size the scoped VMEM limit (defaults are ~16/32 MiB, far below physical 128/64):
    # resident weights (x2 to also cover a double-buffered fallback) + streamed x/out blocks
    # + activation slabs, +25% margin, clamped to [32 MiB, 128 MiB].
    if vmem_limit_bytes is None:
        resident_w = sum(int(a.size) * a.dtype.itemsize for a in flat)
        x_blocks = 2 * tile_m * in_dim_p * mxu_dtype.itemsize
        out_blocks = 2 * tile_m * jnp.dtype(out_dtype).itemsize
        act_blocks = 2 * max_hidden_p * tile_m * (4 + mxu_dtype.itemsize)
        need = 2 * resident_w + x_blocks + out_blocks + act_blocks
        vmem_limit_bytes = int(min(max(need * 1.25, 32 << 20), 128 << 20))

    grid = (n_padded // tile_m,)
    gelu_fn = _gelu_tanh if gelu_approximate else _gelu_exact
    kernel = functools.partial(_mlp_kernel, n_linear=n_linear,
                               compute_dtype=mxu_dtype, gelu_fn=gelu_fn)

    def build(single_buffer_weights):
        # x: streamed (tile_m, in_dim_p) blocks (default double-buffering).
        # TODO(synk): if the x-load DMA shows up exposed for small hidden_dim, raise this
        # spec to pipeline_mode=pl.Buffered(3).
        in_specs = [pl.BlockSpec((tile_m, in_dim_p), lambda i: (i, 0))]
        for a in flat:
            if single_buffer_weights:
                # Constant index_map -> fetched once and kept resident; a second pipeline
                # buffer would be pure VMEM waste.
                in_specs.append(pl.BlockSpec(a.shape, lambda i: (0, 0),
                                             pipeline_mode=pl.Buffered(1)))
            else:
                in_specs.append(pl.BlockSpec(a.shape, lambda i: (0, 0)))
        return pl.pallas_call(
            kernel,
            out_shape=jax.ShapeDtypeStruct((1, n_padded), out_dtype),
            grid_spec=pltpu.PrefetchScalarGridSpec(
                num_scalar_prefetch=0,
                grid=grid,
                in_specs=in_specs,
                # Lane-dense output: full-width (1, tile_m) stores, no masked partial stores.
                out_specs=pl.BlockSpec((1, tile_m), lambda i: (0, i)),
            ),
            compiler_params=pltpu.CompilerParams(
                dimension_semantics=("parallel",),
                vmem_limit_bytes=vmem_limit_bytes,
            ),
        )

    try:
        out = build(single_buffer_weights=hasattr(pl, "Buffered"))(x_in, *flat)
    except Exception:
        # Fallback for lowering paths that reject single-buffered constant specs.
        out = build(single_buffer_weights=False)(x_in, *flat)

    return out[0, :n_rows].reshape(*orig_lead, 1)


# ---------------------------------------------------------------------------
# Pure-JAX reference (exact-erf GELU, all-f32 — matches the torch module)
# ---------------------------------------------------------------------------
def classification_head_ref(x, params):
    h = x
    n = len(params)
    for i, (w, b) in enumerate(params):
        h = h @ w.T + b
        if i < n - 1:
            h = 0.5 * h * (1.0 + jax.scipy.special.erf(h * 0.7071067811865476))
    return h


if __name__ == "__main__":
    key = jax.random.PRNGKey(0)
    batch, seq, in_dim, hidden_dim, n_layers = 2, 8, 32, 32, 2

    k_x, k_p, k_x2 = jax.random.split(key, 3)
    x = jax.random.normal(k_x, (batch, seq, in_dim), jnp.float32)
    params = init_params(k_p, in_dim, hidden_dim, n_layers)
    ref = classification_head_ref(x, params)

    # 1) Default fast path: bf16 MXU operands + tanh GELU (f32 accumulation/epilogue).
    out = jax.block_until_ready(classification_head(x, params))
    assert out.shape == (batch, seq, 1), out.shape
    assert jnp.max(jnp.abs(out - ref)) < 5e-2, float(jnp.max(jnp.abs(out - ref)))

    # 2) Exact path: f32 MXU + exact-erf GELU, tight tolerance vs the f32 reference.
    out_exact = jax.block_until_ready(
        classification_head(x, params, mxu_dtype=jnp.float32, gelu_approximate=False))
    assert jnp.max(jnp.abs(out_exact - ref)) < 1e-4, float(jnp.max(jnp.abs(out_exact - ref)))

    # 3) Multi-block grid + row padding path (exact settings, tight tolerance).
    x2 = jax.random.normal(k_x2, (5, 130, in_dim), jnp.float32)
    ref2 = classification_head_ref(x2, params)
    out2 = jax.block_until_ready(
        classification_head(x2, params, tile_m=128,
                            mxu_dtype=jnp.float32, gelu_approximate=False))
    assert out2.shape == (5, 130, 1), out2.shape
    assert jnp.max(jnp.abs(out2 - ref2)) < 1e-4, float(jnp.max(jnp.abs(out2 - ref2)))

    # 4) Default settings on the larger input: exercises the "split into >=2 grid steps"
    #    clamp (both v7x TensorCores usable) with the bf16/tanh fast path.
    out3 = jax.block_until_ready(classification_head(x2, params))
    assert out3.shape == (5, 130, 1), out3.shape
    assert jnp.max(jnp.abs(out3 - ref2)) < 5e-2, float(jnp.max(jnp.abs(out3 - ref2)))

    print("KERNEL_OK")
</pallas_src>

<mosaic_0001>
module attributes {stable_mosaic.version = 11 : i64} {
  func.func @_mlp_kernel(%arg0: i32, %arg1: memref<128x128xbf16, #tpu.memory_space<vmem>>, %arg2: memref<128x128xbf16, #tpu.memory_space<vmem>>, %arg3: memref<128x1xf32, #tpu.memory_space<vmem>>, %arg4: memref<128x128xbf16, #tpu.memory_space<vmem>>, %arg5: memref<128x1xf32, #tpu.memory_space<vmem>>, %arg6: memref<128x1xf32, #tpu.memory_space<vmem>>, %arg7: memref<1x1xf32, #tpu.memory_space<vmem>>, %arg8: memref<1x128xf32, #tpu.memory_space<vmem>>) attributes {dimension_semantics = [#tpu.dimension_semantics<parallel>], iteration_bounds = array<i64: 1>, scalar_prefetch = 0 : i64, scratch_operands = 0 : i64, tpu.core_type = #tpu.core_type<tc>, window_params = [{transform_indices = @transform_0, window_bounds = array<i64: 128, 128>}, {pipeline_mode = #tpu.pipeline_mode<synchronous>, transform_indices = @transform_1, window_bounds = array<i64: 128, 128>}, {pipeline_mode = #tpu.pipeline_mode<synchronous>, transform_indices = @transform_2, window_bounds = array<i64: 128, 1>}, {pipeline_mode = #tpu.pipeline_mode<synchronous>, transform_indices = @transform_3, window_bounds = array<i64: 128, 128>}, {pipeline_mode = #tpu.pipeline_mode<synchronous>, transform_indices = @transform_4, window_bounds = array<i64: 128, 1>}, {pipeline_mode = #tpu.pipeline_mode<synchronous>, transform_indices = @transform_5, window_bounds = array<i64: 128, 1>}, {pipeline_mode = #tpu.pipeline_mode<synchronous>, transform_indices = @transform_6, window_bounds = array<i64: 1, 1>}, {transform_indices = @transform_7, window_bounds = array<i64: 1, 128>}]} {
    %c0 = arith.constant 0 : index
    %c0_0 = arith.constant 0 : index
    %0 = vector.load %arg2[%c0, %c0_0] : memref<128x128xbf16, #tpu.memory_space<vmem>>, vector<128x128xbf16>
    %c0_1 = arith.constant 0 : index
    %c0_2 = arith.constant 0 : index
    %1 = vector.load %arg3[%c0_1, %c0_2] : memref<128x1xf32, #tpu.memory_space<vmem>>, vector<128x1xf32>
    %c0_3 = arith.constant 0 : index
    %c0_4 = arith.constant 0 : index
    %2 = vector.load %arg1[%c0_3, %c0_4] : memref<128x128xbf16, #tpu.memory_space<vmem>>, vector<128x128xbf16>
    %cst = arith.constant dense<0.000000e+00> : vector<128x128xf32>
    %3 = tpu.matmul %0, %2, %cst {dimension_numbers = #tpu.dot_dimension_numbers<[1], [1], [0], [0], [0, 0, 1, 0], [], []>} : vector<128x128xbf16>, vector<128x128xbf16>, vector<128x128xf32> -> vector<128x128xf32>
    %4 = vector.broadcast %1 : vector<128x1xf32> to vector<128x128xf32>
    %5 = arith.addf %3, %4 : vector<128x128xf32>
    %cst_5 = arith.constant 5.000000e-01 : f32
    %6 = vector.broadcast %cst_5 : f32 to vector<128x128xf32>
    %7 = arith.mulf %6, %5 : vector<128x128xf32>
    %cst_6 = arith.constant 4.471500e-02 : f32
    %8 = vector.broadcast %cst_6 : f32 to vector<128x128xf32>
    %9 = arith.mulf %8, %5 : vector<128x128xf32>
    %10 = arith.mulf %9, %5 : vector<128x128xf32>
    %11 = arith.mulf %10, %5 : vector<128x128xf32>
    %12 = arith.addf %5, %11 : vector<128x128xf32>
    %cst_7 = arith.constant 0.797884583 : f32
    %13 = vector.broadcast %cst_7 : f32 to vector<128x128xf32>
    %14 = arith.mulf %13, %12 : vector<128x128xf32>
    %15 = math.tanh %14 : vector<128x128xf32>
    %cst_8 = arith.constant 1.000000e+00 : f32
    %16 = vector.broadcast %cst_8 : f32 to vector<128x128xf32>
    %17 = arith.addf %16, %15 : vector<128x128xf32>
    %18 = arith.mulf %7, %17 : vector<128x128xf32>
    %19 = arith.truncf %18 : vector<128x128xf32> to vector<128x128xbf16>
    %c0_9 = arith.constant 0 : index
    %c0_10 = arith.constant 0 : index
    %20 = vector.load %arg4[%c0_9, %c0_10] : memref<128x128xbf16, #tpu.memory_space<vmem>>, vector<128x128xbf16>
    %c0_11 = arith.constant 0 : index
    %c0_12 = arith.constant 0 : index
    %21 = vector.load %arg5[%c0_11, %c0_12] : memref<128x1xf32, #tpu.memory_space<vmem>>, vector<128x1xf32>
    %cst_13 = arith.constant dense<0.000000e+00> : vector<128x128xf32>
    %22 = tpu.matmul %20, %19, %cst_13 {dimension_numbers = #tpu.dot_dimension_numbers<[1], [0], [0], [1], [0, 0, 1, 1], [], []>} : vector<128x128xbf16>, vector<128x128xbf16>, vector<128x128xf32> -> vector<128x128xf32>
    %23 = vector.broadcast %21 : vector<128x1xf32> to vector<128x128xf32>
    %24 = arith.addf %22, %23 : vector<128x128xf32>
    %cst_14 = arith.constant 5.000000e-01 : f32
    %25 = vector.broadcast %cst_14 : f32 to vector<128x128xf32>
    %26 = arith.mulf %25, %24 : vector<128x128xf32>
    %cst_15 = arith.constant 4.471500e-02 : f32
    %27 = vector.broadcast %cst_15 : f32 to vector<128x128xf32>
    %28 = arith.mulf %27, %24 : vector<128x128xf32>
    %29 = arith.mulf %28, %24 : vector<128x128xf32>
    %30 = arith.mulf %29, %24 : vector<128x128xf32>
    %31 = arith.addf %24, %30 : vector<128x128xf32>
    %cst_16 = arith.constant 0.797884583 : f32
    %32 = vector.broadcast %cst_16 : f32 to vector<128x128xf32>
    %33 = arith.mulf %32, %31 : vector<128x128xf32>
    %34 = math.tanh %33 : vector<128x128xf32>
    %cst_17 = arith.constant 1.000000e+00 : f32
    %35 = vector.broadcast %cst_17 : f32 to vector<128x128xf32>
    %36 = arith.addf %35, %34 : vector<128x128xf32>
    %37 = arith.mulf %26, %36 : vector<128x128xf32>
    %c0_18 = arith.constant 0 : index
    %c0_19 = arith.constant 0 : index
    %38 = vector.load %arg6[%c0_18, %c0_19] : memref<128x1xf32, #tpu.memory_space<vmem>>, vector<128x1xf32>
    %c0_20 = arith.constant 0 : index
    %c0_21 = arith.constant 0 : index
    %39 = vector.load %arg7[%c0_20, %c0_21] : memref<1x1xf32, #tpu.memory_space<vmem>>, vector<1x1xf32>
    %40 = vector.broadcast %38 : vector<128x1xf32> to vector<128x128xf32>
    %41 = arith.mulf %37, %40 : vector<128x128xf32>
    %cst_22 = arith.constant dense<0.000000e+00> : vector<128xf32>
    %42 = vector.multi_reduction <add>, %41, %cst_22 [0] : vector<128x128xf32> to vector<128xf32>
    %43 = vector.shape_cast %42 : vector<128xf32> to vector<1x128xf32>
    %44 = vector.broadcast %39 : vector<1x1xf32> to vector<1x128xf32>
    %45 = arith.addf %43, %44 : vector<1x128xf32>
    %c0_23 = arith.constant 0 : index
    %c0_24 = arith.constant 0 : index
    %46 = vector.load %arg8[%c0_23, %c0_24] : memref<1x128xf32, #tpu.memory_space<vmem>>, vector<1x128xf32>
    tpu.vector_store %arg8[%c0_23, %c0_24], %45 {strides = array<i32>} : memref<1x128xf32, #tpu.memory_space<vmem>>, vector<1x128xf32>,
    return
  }
  func.func @transform_0(%arg0: i32) -> (i32, i32) {
    %c0_i32 = arith.constant 0 : i32
    %c0_i32_0 = arith.constant 0 : i32
    return %arg0, %c0_i32 : i32, i32
  }
  func.func @transform_1(%arg0: i32) -> (i32, i32) {
    %c0_i32 = arith.constant 0 : i32
    %c0_i32_0 = arith.constant 0 : i32
    %c0_i32_1 = arith.constant 0 : i32
    return %c0_i32, %c0_i32_0 : i32, i32
  }
  func.func @transform_2(%arg0: i32) -> (i32, i32) {
    %c0_i32 = arith.constant 0 : i32
    %c0_i32_0 = arith.constant 0 : i32
    %c0_i32_1 = arith.constant 0 : i32
    return %c0_i32, %c0_i32_0 : i32, i32
  }
  func.func @transform_3(%arg0: i32) -> (i32, i32) {
    %c0_i32 = arith.constant 0 : i32
    %c0_i32_0 = arith.constant 0 : i32
    %c0_i32_1 = arith.constant 0 : i32
    return %c0_i32, %c0_i32_0 : i32, i32
  }
  func.func @transform_4(%arg0: i32) -> (i32, i32) {
    %c0_i32 = arith.constant 0 : i32
    %c0_i32_0 = arith.constant 0 : i32
    %c0_i32_1 = arith.constant 0 : i32
    return %c0_i32, %c0_i32_0 : i32, i32
  }
  func.func @transform_5(%arg0: i32) -> (i32, i32) {
    %c0_i32 = arith.constant 0 : i32
    %c0_i32_0 = arith.constant 0 : i32
    %c0_i32_1 = arith.constant 0 : i32
    return %c0_i32, %c0_i32_0 : i32, i32
  }
  func.func @transform_6(%arg0: i32) -> (i32, i32) {
    %c0_i32 = arith.constant 0 : i32
    %c0_i32_0 = arith.constant 0 : i32
    %c0_i32_1 = arith.constant 0 : i32
    return %c0_i32, %c0_i32_0 : i32, i32
  }
  func.func @transform_7(%arg0: i32) -> (i32, i32) {
    %c0_i32 = arith.constant 0 : i32
    %c0_i32_0 = arith.constant 0 : i32
    return %c0_i32, %arg0 : i32, i32
  }
}

module attributes {stable_mosaic.version = 11 : i64} {
  func.func @_mlp_kernel(%arg0: i32, %arg1: memref<128x128xbf16, #tpu.memory_space<vmem>>, %arg2: memref<128x128xbf16, #tpu.memory_space<vmem>>, %arg3: memref<128x1xf32, #tpu.memory_space<vmem>>, %arg4: memref<128x128xbf16, #tpu.memory_space<vmem>>, %arg5: memref<128x1xf32, #tpu.memory_space<vmem>>, %arg6: memref<128x1xf32, #tpu.memory_space<vmem>>, %arg7: memref<1x1xf32, #tpu.memory_space<vmem>>, %arg8: memref<1x128xf32, #tpu.memory_space<vmem>>) attributes {dimension_semantics = [#tpu.dimension_semantics<parallel>], iteration_bounds = array<i64: 1>, scalar_prefetch = 0 : i64, scratch_operands = 0 : i64, tpu.core_type = #tpu.core_type<tc>, window_params = [{transform_indices = @transform_0, window_bounds = array<i64: 128, 128>}, {pipeline_mode = #tpu.pipeline_mode<synchronous>, transform_indices = @transform_1, window_bounds = array<i64: 128, 128>}, {pipeline_mode = #tpu.pipeline_mode<synchronous>, transform_indices = @transform_2, window_bounds = array<i64: 128, 1>}, {pipeline_mode = #tpu.pipeline_mode<synchronous>, transform_indices = @transform_3, window_bounds = array<i64: 128, 128>}, {pipeline_mode = #tpu.pipeline_mode<synchronous>, transform_indices = @transform_4, window_bounds = array<i64: 128, 1>}, {pipeline_mode = #tpu.pipeline_mode<synchronous>, transform_indices = @transform_5, window_bounds = array<i64: 128, 1>}, {pipeline_mode = #tpu.pipeline_mode<synchronous>, transform_indices = @transform_6, window_bounds = array<i64: 1, 1>}, {transform_indices = @transform_7, window_bounds = array<i64: 1, 128>}]} {
    %c0 = arith.constant 0 : index
    %c0_0 = arith.constant 0 : index
    %0 = vector.load %arg2[%c0, %c0_0] : memref<128x128xbf16, #tpu.memory_space<vmem>>, vector<128x128xbf16>
    %c0_1 = arith.constant 0 : index
    %c0_2 = arith.constant 0 : index
    %1 = vector.load %arg3[%c0_1, %c0_2] : memref<128x1xf32, #tpu.memory_space<vmem>>, vector<128x1xf32>
    %c0_3 = arith.constant 0 : index
    %c0_4 = arith.constant 0 : index
    %2 = vector.load %arg1[%c0_3, %c0_4] : memref<128x128xbf16, #tpu.memory_space<vmem>>, vector<128x128xbf16>
    %cst = arith.constant dense<0.000000e+00> : vector<128x128xf32>
    %3 = tpu.matmul %0, %2, %cst {dimension_numbers = #tpu.dot_dimension_numbers<[1], [1], [0], [0], [0, 0, 1, 0], [], []>} : vector<128x128xbf16>, vector<128x128xbf16>, vector<128x128xf32> -> vector<128x128xf32>
    %4 = vector.broadcast %1 : vector<128x1xf32> to vector<128x128xf32>
    %5 = arith.addf %3, %4 : vector<128x128xf32>
    %cst_5 = arith.constant 5.000000e-01 : f32
    %6 = vector.broadcast %cst_5 : f32 to vector<128x128xf32>
    %7 = arith.mulf %6, %5 : vector<128x128xf32>
    %cst_6 = arith.constant 4.471500e-02 : f32
    %8 = vector.broadcast %cst_6 : f32 to vector<128x128xf32>
    %9 = arith.mulf %8, %5 : vector<128x128xf32>
    %10 = arith.mulf %9, %5 : vector<128x128xf32>
    %11 = arith.mulf %10, %5 : vector<128x128xf32>
    %12 = arith.addf %5, %11 : vector<128x128xf32>
    %cst_7 = arith.constant 0.797884583 : f32
    %13 = vector.broadcast %cst_7 : f32 to vector<128x128xf32>
    %14 = arith.mulf %13, %12 : vector<128x128xf32>
    %15 = math.tanh %14 : vector<128x128xf32>
    %cst_8 = arith.constant 1.000000e+00 : f32
    %16 = vector.broadcast %cst_8 : f32 to vector<128x128xf32>
    %17 = arith.addf %16, %15 : vector<128x128xf32>
    %18 = arith.mulf %7, %17 : vector<128x128xf32>
    %19 = arith.truncf %18 : vector<128x128xf32> to vector<128x128xbf16>
    %c0_9 = arith.constant 0 : index
    %c0_10 = arith.constant 0 : index
    %20 = vector.load %arg4[%c0_9, %c0_10] : memref<128x128xbf16, #tpu.memory_space<vmem>>, vector<128x128xbf16>
    %c0_11 = arith.constant 0 : index
    %c0_12 = arith.constant 0 : index
    %21 = vector.load %arg5[%c0_11, %c0_12] : memref<128x1xf32, #tpu.memory_space<vmem>>, vector<128x1xf32>
    %cst_13 = arith.constant dense<0.000000e+00> : vector<128x128xf32>
    %22 = tpu.matmul %20, %19, %cst_13 {dimension_numbers = #tpu.dot_dimension_numbers<[1], [0], [0], [1], [0, 0, 1, 1], [], []>} : vector<128x128xbf16>, vector<128x128xbf16>, vector<128x128xf32> -> vector<128x128xf32>
    %23 = vector.broadcast %21 : vector<128x1xf32> to vector<128x128xf32>
    %24 = arith.addf %22, %23 : vector<128x128xf32>
    %cst_14 = arith.constant 5.000000e-01 : f32
    %25 = vector.broadcast %cst_14 : f32 to vector<128x128xf32>
    %26 = arith.mulf %25, %24 : vector<128x128xf32>
    %cst_15 = arith.constant 4.471500e-02 : f32
    %27 = vector.broadcast %cst_15 : f32 to vector<128x128xf32>
    %28 = arith.mulf %27, %24 : vector<128x128xf32>
    %29 = arith.mulf %28, %24 : vector<128x128xf32>
    %30 = arith.mulf %29, %24 : vector<128x128xf32>
    %31 = arith.addf %24, %30 : vector<128x128xf32>
    %cst_16 = arith.constant 0.797884583 : f32
    %32 = vector.broadcast %cst_16 : f32 to vector<128x128xf32>
    %33 = arith.mulf %32, %31 : vector<128x128xf32>
    %34 = math.tanh %33 : vector<128x128xf32>
    %cst_17 = arith.constant 1.000000e+00 : f32
    %35 = vector.broadcast %cst_17 : f32 to vector<128x128xf32>
    %36 = arith.addf %35, %34 : vector<128x128xf32>
    %37 = arith.mulf %26, %36 : vector<128x128xf32>
    %c0_18 = arith.constant 0 : index
    %c0_19 = arith.constant 0 : index
    %38 = vector.load %arg6[%c0_18, %c0_19] : memref<128x1xf32, #tpu.memory_space<vmem>>, vector<128x1xf32>
    %c0_20 = arith.constant 0 : index
    %c0_21 = arith.constant 0 : index
    %39 = vector.load %arg7[%c0_20, %c0_21] : memref<1x1xf32, #tpu.memory_space<vmem>>, vector<1x1xf32>
    %40 = vector.broadcast %38 : vector<128x1xf32> to vector<128x128xf32>
    %41 = arith.mulf %37, %40 : vector<128x128xf32>
    %cst_22 = arith.constant dense<0.000000e+00> : vector<128xf32>
    %42 = vector.multi_reduction <add>, %41, %cst_22 [0] : vector<128x128xf32> to vector<128xf32>
    %43 = vector.shape_cast %42 : vector<128xf32> to vector<1x128xf32>
    %44 = vector.broadcast %39 : vector<1x1xf32> to vector<1x128xf32>
    %45 = arith.addf %43, %44 : vector<1x128xf32>
    %c0_23 = arith.constant 0 : index
    %c0_24 = arith.constant 0 : index
    %46 = vector.load %arg8[%c0_23, %c0_24] : memref<1x128xf32, #tpu.memory_space<vmem>>, vector<1x128xf32>
    tpu.vector_store %arg8[%c0_23, %c0_24], %45 {strides = array<i32>} : memref<1x128xf32, #tpu.memory_space<vmem>>, vector<1x128xf32>,
    return
  }
  func.func @transform_0(%arg0: i32) -> (i32, i32) {
    %c0_i32 = arith.constant 0 : i32
    %c0_i32_0 = arith.constant 0 : i32
    return %arg0, %c0_i32 : i32, i32
  }
  func.func @transform_1(%arg0: i32) -> (i32, i32) {
    %c0_i32 = arith.constant 0 : i32
    %c0_i32_0 = arith.constant 0 : i32
    %c0_i32_1 = arith.constant 0 : i32
    return %c0_i32, %c0_i32_0 : i32, i32
  }
  func.func @transform_2(%arg0: i32) -> (i32, i32) {
    %c0_i32 = arith.constant 0 : i32
    %c0_i32_0 = arith.constant 0 : i32
    %c0_i32_1 = arith.constant 0 : i32
    return %c0_i32, %c0_i32_0 : i32, i32
  }
  func.func @transform_3(%arg0: i32) -> (i32, i32) {
    %c0_i32 = arith.constant 0 : i32
    %c0_i32_0 = arith.constant 0 : i32
    %c0_i32_1 = arith.constant 0 : i32
    return %c0_i32, %c0_i32_0 : i32, i32
  }
  func.func @transform_4(%arg0: i32) -> (i32, i32) {
    %c0_i32 = arith.constant 0 : i32
    %c0_i32_0 = arith.constant 0 : i32
    %c0_i32_1 = arith.constant 0 : i32
    return %c0_i32, %c0_i32_0 : i32, i32
  }
  func.func @transform_5(%arg0: i32) -> (i32, i32) {
    %c0_i32 = arith.constant 0 : i32
    %c0_i32_0 = arith.constant 0 : i32
    %c0_i32_1 = arith.constant 0 : i32
    return %c0_i32, %c0_i32_0 : i32, i32
  }
  func.func @transform_6(%arg0: i32) -> (i32, i32) {
    %c0_i32 = arith.constant 0 : i32
    %c0_i32_0 = arith.constant 0 : i32
    %c0_i32_1 = arith.constant 0 : i32
    return %c0_i32, %c0_i32_0 : i32, i32
  }
  func.func @transform_7(%arg0: i32) -> (i32, i32) {
    %c0_i32 = arith.constant 0 : i32
    %c0_i32_0 = arith.constant 0 : i32
    return %c0_i32, %arg0 : i32, i32
  }
}

</mosaic_0001>

<llo_original>
// kernel: tpu_custom_call.1
$region0: #{tpu_custom_call.1}
  #allocation0 [shape = 'u32[]', space=smem, size = 0x4, offset = 0x4, fixed_abs, tag = 'smem constant byte address 0x4 - core index']
  #allocation1 [shape = 'u32[144,128]{1,0:T(1,128)}', space=vmem, size = 0x12000, scoped, tag = 'internal scratch']
  #allocation2 [shape = 'f32[1,1]{1,0:T(1,128)S(1)}', space=vmem, size = 0x200, scoped, tag = 'scoped memory for tpu_custom_call.1']
  %s0 = inlined_call_operand.vmem [shape: bf16[128,128], index: 0, kind: input, shape index: {}]
  %s1 = inlined_call_operand.vmem [shape: bf16[128,128], index: 1, kind: input, shape index: {}]
  %s2 = inlined_call_operand.vmem [shape: f32[128,1], index: 2, kind: input, shape index: {}]
  %s3 = inlined_call_operand.vmem [shape: bf16[128,128], index: 3, kind: input, shape index: {}]
  %s4 = inlined_call_operand.vmem [shape: f32[128,1], index: 4, kind: input, shape index: {}]
  %s5 = inlined_call_operand.vmem [shape: f32[128,1], index: 5, kind: input, shape index: {}]
  %s6 = inlined_call_operand.<no memory space> [shape: f32[1,1], index: 6, kind: input, shape index: {}]
  %s7 = inlined_call_operand.hbm [shape: f32[1,128], index: 7, kind: output, shape index: {}]
  %s8 = sld [smem:[#allocation0]]
  $region38: #{tpu_custom_call.1} parent=0
    _
  %s10 = ssub.s32 1, %s8
  %s11 = scalar_select 0, %s10, %s8
  %v12 = vstv %s6
  %13 = vst [vmem:[#allocation2] sm:$0x1] %v12
  $region1: #{tpu_custom_call.1} parent=0
    #allocation3 [shape = 'u8[512]{0}', space=vmem, size = 0x400, scoped, tag = 'output window, operand 0, single buffered']
    #allocation4 [shape = 's32[1]{0}', space=sflag, size = 0x4, scoped, tag = 'scoped memory for tpu_custom_call.1']
    %14 = vsyncpa [#allocation4], 0
    // Predicated region
    $region2: #{tpu_custom_call.1} parent=1 // pred_check
      _
    $region3: #{tpu_custom_call.1} parent=1 // pred_check_branch
      %16 = sbr.rel (0) target = $region5
    $region4: #{tpu_custom_call.1} parent=1 // pred_region
      _
    $region5: #{tpu_custom_call.1} parent=1 // pred_fallthru
      _
    // Predicated region
    $region6: #{tpu_custom_call.1} parent=1 // pred_check
      _
    $region7: #{tpu_custom_call.1} parent=1 // pred_check_branch
      %18 = sbr.rel (0) target = $region9
    $region8: #{tpu_custom_call.1} parent=1 // pred_region
      _
    $region9: #{tpu_custom_call.1} parent=1 // pred_fallthru
      _
    // Predicated region
    $region10: #{tpu_custom_call.1} parent=1 // pred_check
      _
    $region11: #{tpu_custom_call.1} parent=1 // pred_check_branch
      %20 = sbr.rel (0) target = $region13
    $region12: #{tpu_custom_call.1} parent=1 // pred_region
      _
    $region13: #{tpu_custom_call.1} parent=1 // pred_fallthru
      _
    // Predicated region
    $region14: #{tpu_custom_call.1} parent=1 // pred_check
      _
    $region15: #{tpu_custom_call.1} parent=1 // pred_check_branch
      %22 = sbr.rel (0) target = $region17
    $region16: #{tpu_custom_call.1} parent=1 // pred_region
      _
    $region17: #{tpu_custom_call.1} parent=1 // pred_fallthru
      _
    // Predicated region
    $region18: #{tpu_custom_call.1} parent=1 // pred_check
      _
    $region19: #{tpu_custom_call.1} parent=1 // pred_check_branch
      %24 = sbr.rel (0) target = $region21
    $region20: #{tpu_custom_call.1} parent=1 // pred_region
      _
    $region21: #{tpu_custom_call.1} parent=1 // pred_fallthru
      _
    // Predicated region
    $region22: #{tpu_custom_call.1} parent=1 // pred_check
      _
    $region23: #{tpu_custom_call.1} parent=1 // pred_check_branch
      %26 = sbr.rel (0) target = $region25
    $region24: #{tpu_custom_call.1} parent=1 // pred_region
      _
    $region25: #{tpu_custom_call.1} parent=1 // pred_fallthru
      _
    // Predicated region
    $region26: #{tpu_custom_call.1} parent=1 // pred_check
      _
    $region27: #{tpu_custom_call.1} parent=1 // pred_check_branch
      %28 = sbr.rel (0) target = $region29
    $region28: #{tpu_custom_call.1} parent=1 // pred_region
      _
    $region29: #{tpu_custom_call.1} parent=1 // pred_fallthru
      _
    %v30 = vld [vmem:[%s1] sm:$0xf]
    %v31 = vld [vmem:[%s1 + $0x4] sm:$0xf]
    %v32 = vld [vmem:[%s1 + $0x8] sm:$0xf]
    %v33 = vld [vmem:[%s1 + $0xc] sm:$0xf]
    %v34 = vld [vmem:[%s1 + $0x10] sm:$0xf]
    %v35 = vld [vmem:[%s1 + $0x14] sm:$0xf]
    %v36 = vld [vmem:[%s1 + $0x18] sm:$0xf]
    %v37 = vld [vmem:[%s1 + $0x1c] sm:$0xf]
    %v38 = vld [vmem:[%s1 + $0x20] sm:$0xf]
    %v39 = vld [vmem:[%s1 + $0x24] sm:$0xf]
    %v40 = vld [vmem:[%s1 + $0x28] sm:$0xf]
    %v41 = vld [vmem:[%s1 + $0x2c] sm:$0xf]
    %v42 = vld [vmem:[%s1 + $0x30] sm:$0xf]
    %v43 = vld [vmem:[%s1 + $0x34] sm:$0xf]
    %v44 = vld [vmem:[%s1 + $0x38] sm:$0xf]
    %v45 = vld [vmem:[%s1 + $0x3c] sm:$0xf]
    %v46 = vld [vmem:[%s2] sm:$0xff]
    %v47 = vld [vmem:[%s2 + $0x8] sm:$0xff]
    %v48 = vld [vmem:[%s2 + $0x10] sm:$0xff]
    %v49 = vld [vmem:[%s2 + $0x18] sm:$0xff]
    %v50 = vld [vmem:[%s2 + $0x20] sm:$0xff]
    %v51 = vld [vmem:[%s2 + $0x28] sm:$0xff]
    %v52 = vld [vmem:[%s2 + $0x30] sm:$0xff]
    %v53 = vld [vmem:[%s2 + $0x38] sm:$0xff]
    %v54 = vld [vmem:[%s2 + $0x40] sm:$0xff]
    %v55 = vld [vmem:[%s2 + $0x48] sm:$0xff]
    %v56 = vld [vmem:[%s2 + $0x50] sm:$0xff]
    %v57 = vld [vmem:[%s2 + $0x58] sm:$0xff]
    %v58 = vld [vmem:[%s2 + $0x60] sm:$0xff]
    %v59 = vld [vmem:[%s2 + $0x68] sm:$0xff]
    %v60 = vld [vmem:[%s2 + $0x70] sm:$0xff]
    %v61 = vld [vmem:[%s2 + $0x78] sm:$0xff]
    %v62 = vld [vmem:[%s0] sm:$0xf]
    %v63 = vld [vmem:[%s0 + $0x4] sm:$0xf]
    %v64 = vld [vmem:[%s0 + $0x8] sm:$0xf]
    %v65 = vld [vmem:[%s0 + $0xc] sm:$0xf]
    %v66 = vld [vmem:[%s0 + $0x10] sm:$0xf]
    %v67 = vld [vmem:[%s0 + $0x14] sm:$0xf]
    %v68 = vld [vmem:[%s0 + $0x18] sm:$0xf]
    %v69 = vld [vmem:[%s0 + $0x1c] sm:$0xf]
    %v70 = vld [vmem:[%s0 + $0x20] sm:$0xf]
    %v71 = vld [vmem:[%s0 + $0x24] sm:$0xf]
    %v72 = vld [vmem:[%s0 + $0x28] sm:$0xf]
    %v73 = vld [vmem:[%s0 + $0x2c] sm:$0xf]
    %v74 = vld [vmem:[%s0 + $0x30] sm:$0xf]
    %v75 = vld [vmem:[%s0 + $0x34] sm:$0xf]
    %v76 = vld [vmem:[%s0 + $0x38] sm:$0xf]
    %v77 = vld [vmem:[%s0 + $0x3c] sm:$0xf]
    %79 = vset.pattern.permute.xlu0 0
    %80 = vperm.xlu0 %79, %v46
    %v81 = vpop.permute.xlu0 %80
    %84 = vset.pattern.permute.xlu0 0
    %85 = vperm.xlu0 %84, %v47
    %v86 = vpop.permute.xlu0 %85
    %89 = vset.pattern.permute.xlu0 0
    %90 = vperm.xlu0 %89, %v48
    %v91 = vpop.permute.xlu0 %90
    %94 = vset.pattern.permute.xlu0 0
    %95 = vperm.xlu0 %94, %v49
    %v96 = vpop.permute.xlu0 %95
    %99 = vset.pattern.permute.xlu0 0
    %100 = vperm.xlu0 %99, %v50
    %v101 = vpop.permute.xlu0 %100
    %104 = vset.pattern.permute.xlu0 0
    %105 = vperm.xlu0 %104, %v51
    %v106 = vpop.permute.xlu0 %105
    %109 = vset.pattern.permute.xlu0 0
    %110 = vperm.xlu0 %109, %v52
    %v111 = vpop.permute.xlu0 %110
    %114 = vset.pattern.permute.xlu0 0
    %115 = vperm.xlu0 %114, %v53
    %v116 = vpop.permute.xlu0 %115
    %119 = vset.pattern.permute.xlu0 0
    %120 = vperm.xlu0 %119, %v54
    %v121 = vpop.permute.xlu0 %120
    %124 = vset.pattern.permute.xlu0 0
    %125 = vperm.xlu0 %124, %v55
    %v126 = vpop.permute.xlu0 %125
    %129 = vset.pattern.permute.xlu0 0
    %130 = vperm.xlu0 %129, %v56
    %v131 = vpop.permute.xlu0 %130
    %134 = vset.pattern.permute.xlu0 0
    %135 = vperm.xlu0 %134, %v57
    %v136 = vpop.permute.xlu0 %135
    %139 = vset.pattern.permute.xlu0 0
    %140 = vperm.xlu0 %139, %v58
    %v141 = vpop.permute.xlu0 %140
    %144 = vset.pattern.permute.xlu0 0
    %145 = vperm.xlu0 %144, %v59
    %v146 = vpop.permute.xlu0 %145
    %149 = vset.pattern.permute.xlu0 0
    %150 = vperm.xlu0 %149, %v60
    %v151 = vpop.permute.xlu0 %150
    %154 = vset.pattern.permute.xlu0 0
    %155 = vperm.xlu0 %154, %v61
    %v156 = vpop.permute.xlu0 %155
    %v174 = vunpack.c.l.b16 %v30
    %v175 = vunpack.c.l.b16 %v31
    %v176 = vunpack.c.l.b16 %v32
    %v177 = vunpack.c.l.b16 %v33
    %v178 = vunpack.c.l.b16 %v34
    %v179 = vunpack.c.l.b16 %v35
    %v180 = vunpack.c.l.b16 %v36
    %v181 = vunpack.c.l.b16 %v37
    %v182 = vunpack.c.l.b16 %v38
    %v183 = vunpack.c.l.b16 %v39
    %v184 = vunpack.c.l.b16 %v40
    %v185 = vunpack.c.l.b16 %v41
    %v186 = vunpack.c.l.b16 %v42
    %v187 = vunpack.c.l.b16 %v43
    %v188 = vunpack.c.l.b16 %v44
    %v189 = vunpack.c.l.b16 %v45
    %v190 = vpack.c.b16 %v175, %v174
    %v191 = vpack.c.b16 %v177, %v176
    %v192 = vpack.c.b16 %v179, %v178
    %v193 = vpack.c.b16 %v181, %v180
    %v194 = vpack.c.b16 %v183, %v182
    %v195 = vpack.c.b16 %v185, %v184
    %v196 = vpack.c.b16 %v187, %v186
    %v197 = vpack.c.b16 %v189, %v188
    %v222 = vunpack.c.l.b16 %v62
    %v223 = vunpack.c.l.b16 %v63
    %v224 = vunpack.c.l.b16 %v64
    %v225 = vunpack.c.l.b16 %v65
    %v226 = vunpack.c.l.b16 %v66
    %v227 = vunpack.c.l.b16 %v67
    %v228 = vunpack.c.l.b16 %v68
    %v229 = vunpack.c.l.b16 %v69
    %v230 = vunpack.c.l.b16 %v70
    %v231 = vunpack.c.l.b16 %v71
    %v232 = vunpack.c.l.b16 %v72
    %v233 = vunpack.c.l.b16 %v73
    %v234 = vunpack.c.l.b16 %v74
    %v235 = vunpack.c.l.b16 %v75
    %v236 = vunpack.c.l.b16 %v76
    %v237 = vunpack.c.l.b16 %v77
    %v238 = vpack.c.b16 %v223, %v222
    %v239 = vpack.c.b16 %v225, %v224
    %v240 = vpack.c.b16 %v227, %v226
    %v241 = vpack.c.b16 %v229, %v228
    %v242 = vpack.c.b16 %v231, %v230
    %v243 = vpack.c.b16 %v233, %v232
    %v244 = vpack.c.b16 %v235, %v234
    %v245 = vpack.c.b16 %v237, %v236
    %254 = vmatprep.subr.bf16.mxu0 0
    %255 = vmatpush1.bf16.xpose.msra.mxu0 %v238
    %256 = vmatprep.subr.bf16.mxu0 0
    %257 = vmatpush1.bf16.xpose.msra.mxu0 %v239
    %258 = vmatprep.subr.bf16.mxu0 0
    %259 = vmatpush1.bf16.xpose.msra.mxu0 %v240
    %260 = vmatprep.subr.bf16.mxu0 0
    %261 = vmatpush1.bf16.xpose.msra.mxu0 %v241
    %262 = vmatprep.subr.bf16.mxu0 0
    %263 = vmatpush1.bf16.xpose.msra.mxu0 %v242
    %264 = vmatprep.subr.bf16.mxu0 0
    %265 = vmatpush1.bf16.xpose.msra.mxu0 %v243
    %266 = vmatprep.subr.bf16.mxu0 0
    %267 = vmatpush1.bf16.xpose.msra.mxu0 %v244
    %268 = vmatprep.subr.bf16.mxu0 0
    %269 = vmatpush1.bf16.xpose.msra.mxu0 %v245
    %270 = vmatprep.subr.bf16.mxu0 0
    %271 = vmatpush1.bf16.xpose.msra.mxu0 0
    %272 = vmatprep.subr.bf16.mxu0 0
    %273 = vmatpush1.bf16.xpose.msra.mxu0 0
    %274 = vmatprep.subr.bf16.mxu0 0
    %275 = vmatpush1.bf16.xpose.msra.mxu0 0
    %276 = vmatprep.subr.bf16.mxu0 0
    %277 = vmatpush1.bf16.xpose.msra.mxu0 0
    %278 = vmatprep.subr.bf16.mxu0 0
    %279 = vmatpush1.bf16.xpose.msra.mxu0 0
    %280 = vmatprep.subr.bf16.mxu0 0
    %281 = vmatpush1.bf16.xpose.msra.mxu0 0
    %282 = vmatprep.subr.bf16.mxu0 0
    %283 = vmatpush1.bf16.xpose.msra.mxu0 0
    %284 = vmatprep.subr.bf16.mxu0 0
    %285 = vmatpush1.bf16.xpose.msra.mxu0 0
    %286 = vmatprep.mubr.bf16.mxu0 0
    %287 = vmatmul.mubr.bf16.gmra.mrb[0].mxu0 %v190
    %v288 = vpop.f32.mrb[0].mxu0
    %v289 = vadd.f32 %v81, %v288
    %v290 = vpop.f32.mrb[0].mxu0
    %v291 = vpop.f32.mrb[0].mxu0
    %v292 = vadd.f32 %v86, %v291
    %v293 = vpop.f32.mrb[0].mxu0
    %294 = vmatprep.mubr.bf16.mxu0 0
    %295 = vmatmul.mubr.bf16.gmra.mrb[0].mxu0 %v191
    %v296 = vpop.f32.mrb[0].mxu0
    %v297 = vadd.f32 %v91, %v296
    %v298 = vpop.f32.mrb[0].mxu0
    %v299 = vpop.f32.mrb[0].mxu0
    %v300 = vadd.f32 %v96, %v299
    %v301 = vpop.f32.mrb[0].mxu0
    %302 = vmatprep.mubr.bf16.mxu0 0
    %303 = vmatmul.mubr.bf16.gmra.mrb[0].mxu0 %v192
    %v304 = vpop.f32.mrb[0].mxu0
    %v305 = vadd.f32 %v101, %v304
    %v306 = vpop.f32.mrb[0].mxu0
    %v307 = vpop.f32.mrb[0].mxu0
    %v308 = vadd.f32 %v106, %v307
    %v309 = vpop.f32.mrb[0].mxu0
    %310 = vmatprep.mubr.bf16.mxu0 0
    %311 = vmatmul.mubr.bf16.gmra.mrb[0].mxu0 %v193
    %v312 = vpop.f32.mrb[0].mxu0
    %v313 = vadd.f32 %v111, %v312
    %v314 = vpop.f32.mrb[0].mxu0
    %v315 = vpop.f32.mrb[0].mxu0
    %v316 = vadd.f32 %v116, %v315
    %v317 = vpop.f32.mrb[0].mxu0
    %318 = vmatprep.mubr.bf16.mxu0 0
    %319 = vmatmul.mubr.bf16.gmra.mrb[0].mxu0 %v194
    %v320 = vpop.f32.mrb[0].mxu0
    %v321 = vadd.f32 %v121, %v320
    %v322 = vpop.f32.mrb[0].mxu0
    %v323 = vpop.f32.mrb[0].mxu0
    %v324 = vadd.f32 %v126, %v323
    %v325 = vpop.f32.mrb[0].mxu0
    %326 = vmatprep.mubr.bf16.mxu0 0
    %327 = vmatmul.mubr.bf16.gmra.mrb[0].mxu0 %v195
    %v328 = vpop.f32.mrb[0].mxu0
    %v329 = vadd.f32 %v131, %v328
    %v330 = vpop.f32.mrb[0].mxu0
    %v331 = vpop.f32.mrb[0].mxu0
    %v332 = vadd.f32 %v136, %v331
    %v333 = vpop.f32.mrb[0].mxu0
    %334 = vmatprep.mubr.bf16.mxu0 0
    %335 = vmatmul.mubr.bf16.gmra.mrb[0].mxu0 %v196
    %v336 = vpop.f32.mrb[0].mxu0
    %v337 = vadd.f32 %v141, %v336
    %v338 = vpop.f32.mrb[0].mxu0
    %v339 = vpop.f32.mrb[0].mxu0
    %v340 = vadd.f32 %v146, %v339
    %v341 = vpop.f32.mrb[0].mxu0
    %342 = vmatprep.mubr.bf16.mxu0 0
    %343 = vmatmul.mubr.bf16.gmra.mrb[0].mxu0 %v197
    %v344 = vpop.f32.mrb[0].mxu0
    %v345 = vadd.f32 %v151, %v344
    %v346 = vpop.f32.mrb[0].mxu0
    %v347 = vpop.f32.mrb[0].mxu0
    %v348 = vadd.f32 %v156, %v347
    %v349 = vpop.f32.mrb[0].mxu0
    %350 = vdwg.mxu0
    %v351 = vmul.f32 %v289, 0.5
    %v352 = vmul.f32 %v292, 0.5
    %v353 = vmul.f32 %v297, 0.5
    %v354 = vmul.f32 %v300, 0.5
    %v355 = vmul.f32 %v305, 0.5
    %v356 = vmul.f32 %v308, 0.5
    %v357 = vmul.f32 %v313, 0.5
    %v358 = vmul.f32 %v316, 0.5
    %v359 = vmul.f32 %v321, 0.5
    %v360 = vmul.f32 %v324, 0.5
    %v361 = vmul.f32 %v329, 0.5
    %v362 = vmul.f32 %v332, 0.5
    %v363 = vmul.f32 %v337, 0.5
    %v364 = vmul.f32 %v340, 0.5
    %v365 = vmul.f32 %v345, 0.5
    %v366 = vmul.f32 %v348, 0.5
    %v367 = vmul.f32 %v289, 0.044715
    %v368 = vmul.f32 %v292, 0.044715
    %v369 = vmul.f32 %v297, 0.044715
    %v370 = vmul.f32 %v300, 0.044715
    %v371 = vmul.f32 %v305, 0.044715
    %v372 = vmul.f32 %v308, 0.044715
    %v373 = vmul.f32 %v313, 0.044715
    %v374 = vmul.f32 %v316, 0.044715
    %v375 = vmul.f32 %v321, 0.044715
    %v376 = vmul.f32 %v324, 0.044715
    %v377 = vmul.f32 %v329, 0.044715
    %v378 = vmul.f32 %v332, 0.044715
    %v379 = vmul.f32 %v337, 0.044715
    %v380 = vmul.f32 %v340, 0.044715
    %v381 = vmul.f32 %v345, 0.044715
    %v382 = vmul.f32 %v348, 0.044715
    %v383 = vmul.f32 %v367, %v289
    %v384 = vmul.f32 %v368, %v292
    %v385 = vmul.f32 %v369, %v297
    %v386 = vmul.f32 %v370, %v300
    %v387 = vmul.f32 %v371, %v305
    %v388 = vmul.f32 %v372, %v308
    %v389 = vmul.f32 %v373, %v313
    %v390 = vmul.f32 %v374, %v316
    %v391 = vmul.f32 %v375, %v321
    %v392 = vmul.f32 %v376, %v324
    %v393 = vmul.f32 %v377, %v329
    %v394 = vmul.f32 %v378, %v332
    %v395 = vmul.f32 %v379, %v337
    %v396 = vmul.f32 %v380, %v340
    %v397 = vmul.f32 %v381, %v345
    %v398 = vmul.f32 %v382, %v348
    %v399 = vmul.f32 %v383, %v289
    %v400 = vmul.f32 %v384, %v292
    %v401 = vmul.f32 %v385, %v297
    %v402 = vmul.f32 %v386, %v300
    %v403 = vmul.f32 %v387, %v305
    %v404 = vmul.f32 %v388, %v308
    %v405 = vmul.f32 %v389, %v313
    %v406 = vmul.f32 %v390, %v316
    %v407 = vmul.f32 %v391, %v321
    %v408 = vmul.f32 %v392, %v324
    %v409 = vmul.f32 %v393, %v329
    %v410 = vmul.f32 %v394, %v332
    %v411 = vmul.f32 %v395, %v337
    %v412 = vmul.f32 %v396, %v340
    %v413 = vmul.f32 %v397, %v345
    %v414 = vmul.f32 %v398, %v348
    %v415 = vadd.f32 %v289, %v399
    %v416 = vadd.f32 %v292, %v400
    %v417 = vadd.f32 %v297, %v401
    %v418 = vadd.f32 %v300, %v402
    %v419 = vadd.f32 %v305, %v403
    %v420 = vadd.f32 %v308, %v404
    %v421 = vadd.f32 %v313, %v405
    %v422 = vadd.f32 %v316, %v406
    %v423 = vadd.f32 %v321, %v407
    %v424 = vadd.f32 %v324, %v408
    %v425 = vadd.f32 %v329, %v409
    %v426 = vadd.f32 %v332, %v410
    %v427 = vadd.f32 %v337, %v411
    %v428 = vadd.f32 %v340, %v412
    %v429 = vadd.f32 %v345, %v413
    %v430 = vadd.f32 %v348, %v414
    %v431 = vmul.f32 %v415, 0.7978846
    %v432 = vmul.f32 %v416, 0.7978846
    %v433 = vmul.f32 %v417, 0.7978846
    %v434 = vmul.f32 %v418, 0.7978846
    %v435 = vmul.f32 %v419, 0.7978846
    %v436 = vmul.f32 %v420, 0.7978846
    %v437 = vmul.f32 %v421, 0.7978846
    %v438 = vmul.f32 %v422, 0.7978846
    %v439 = vmul.f32 %v423, 0.7978846
    %v440 = vmul.f32 %v424, 0.7978846
    %v441 = vmul.f32 %v425, 0.7978846
    %v442 = vmul.f32 %v426, 0.7978846
    %v443 = vmul.f32 %v427, 0.7978846
    %v444 = vmul.f32 %v428, 0.7978846
    %v445 = vmul.f32 %v429, 0.7978846
    %v446 = vmul.f32 %v430, 0.7978846
    %v447 = vtanh.pop %v431
    %v448 = vtanh.pop %v432
    %v449 = vtanh.pop %v433
    %v450 = vtanh.pop %v434
    %v451 = vtanh.pop %v435
    %v452 = vtanh.pop %v436
    %v453 = vtanh.pop %v437
    %v454 = vtanh.pop %v438
    %v455 = vtanh.pop %v439
    %v456 = vtanh.pop %v440
    %v457 = vtanh.pop %v441
    %v458 = vtanh.pop %v442
    %v459 = vtanh.pop %v443
    %v460 = vtanh.pop %v444
    %v461 = vtanh.pop %v445
    %v462 = vtanh.pop %v446
    %v463 = vadd.f32 %v447, 1.0
    %v464 = vadd.f32 %v448, 1.0
    %v465 = vadd.f32 %v449, 1.0
    %v466 = vadd.f32 %v450, 1.0
    %v467 = vadd.f32 %v451, 1.0
    %v468 = vadd.f32 %v452, 1.0
    %v469 = vadd.f32 %v453, 1.0
    %v470 = vadd.f32 %v454, 1.0
    %v471 = vadd.f32 %v455, 1.0
    %v472 = vadd.f32 %v456, 1.0
    %v473 = vadd.f32 %v457, 1.0
    %v474 = vadd.f32 %v458, 1.0
    %v475 = vadd.f32 %v459, 1.0
    %v476 = vadd.f32 %v460, 1.0
    %v477 = vadd.f32 %v461, 1.0
    %v478 = vadd.f32 %v462, 1.0
    %v479 = vmul.f32 %v351, %v463
    %v480 = vmul.f32 %v352, %v464
    %v481 = vmul.f32 %v353, %v465
    %v482 = vmul.f32 %v354, %v466
    %v483 = vmul.f32 %v355, %v467
    %v484 = vmul.f32 %v356, %v468
    %v485 = vmul.f32 %v357, %v469
    %v486 = vmul.f32 %v358, %v470
    %v487 = vmul.f32 %v359, %v471
    %v488 = vmul.f32 %v360, %v472
    %v489 = vmul.f32 %v361, %v473
    %v490 = vmul.f32 %v362, %v474
    %v491 = vmul.f32 %v363, %v475
    %v492 = vmul.f32 %v364, %v476
    %v493 = vmul.f32 %v365, %v477
    %v494 = vmul.f32 %v366, %v478
    %v495 = vpack.c.bf16 %v480, %v479
    %v496 = vpack.c.bf16 %v482, %v481
    %v497 = vpack.c.bf16 %v484, %v483
    %v498 = vpack.c.bf16 %v486, %v485
    %v499 = vpack.c.bf16 %v488, %v487
    %v500 = vpack.c.bf16 %v490, %v489
    %v501 = vpack.c.bf16 %v492, %v491
    %v502 = vpack.c.bf16 %v494, %v493
    %v503 = vld [vmem:[%s3] sm:$0xf]
    %v504 = vld [vmem:[%s3 + $0x4] sm:$0xf]
    %v505 = vld [vmem:[%s3 + $0x8] sm:$0xf]
    %v506 = vld [vmem:[%s3 + $0xc] sm:$0xf]
    %v507 = vld [vmem:[%s3 + $0x10] sm:$0xf]
    %v508 = vld [vmem:[%s3 + $0x14] sm:$0xf]
    %v509 = vld [vmem:[%s3 + $0x18] sm:$0xf]
    %v510 = vld [vmem:[%s3 + $0x1c] sm:$0xf]
    %v511 = vld [vmem:[%s3 + $0x20] sm:$0xf]
    %v512 = vld [vmem:[%s3 + $0x24] sm:$0xf]
    %v513 = vld [vmem:[%s3 + $0x28] sm:$0xf]
    %v514 = vld [vmem:[%s3 + $0x2c] sm:$0xf]
    %v515 = vld [vmem:[%s3 + $0x30] sm:$0xf]
    %v516 = vld [vmem:[%s3 + $0x34] sm:$0xf]
    %v517 = vld [vmem:[%s3 + $0x38] sm:$0xf]
    %v518 = vld [vmem:[%s3 + $0x3c] sm:$0xf]
    %v519 = vld [vmem:[%s4] sm:$0xff]
    %v520 = vld [vmem:[%s4 + $0x8] sm:$0xff]
    %v521 = vld [vmem:[%s4 + $0x10] sm:$0xff]
    %v522 = vld [vmem:[%s4 + $0x18] sm:$0xff]
    %v523 = vld [vmem:[%s4 + $0x20] sm:$0xff]
    %v524 = vld [vmem:[%s4 + $0x28] sm:$0xff]
    %v525 = vld [vmem:[%s4 + $0x30] sm:$0xff]
    %v526 = vld [vmem:[%s4 + $0x38] sm:$0xff]
    %v527 = vld [vmem:[%s4 + $0x40] sm:$0xff]
    %v528 = vld [vmem:[%s4 + $0x48] sm:$0xff]
    %v529 = vld [vmem:[%s4 + $0x50] sm:$0xff]
    %v530 = vld [vmem:[%s4 + $0x58] sm:$0xff]
    %v531 = vld [vmem:[%s4 + $0x60] sm:$0xff]
    %v532 = vld [vmem:[%s4 + $0x68] sm:$0xff]
    %v533 = vld [vmem:[%s4 + $0x70] sm:$0xff]
    %v534 = vld [vmem:[%s4 + $0x78] sm:$0xff]
    %536 = vset.pattern.permute.xlu0 0
    %537 = vperm.xlu0 %536, %v519
    %v538 = vpop.permute.xlu0 %537
    %541 = vset.pattern.permute.xlu0 0
    %542 = vperm.xlu0 %541, %v520
    %v543 = vpop.permute.xlu0 %542
    %546 = vset.pattern.permute.xlu0 0
    %547 = vperm.xlu0 %546, %v521
    %v548 = vpop.permute.xlu0 %547
    %551 = vset.pattern.permute.xlu0 0
    %552 = vperm.xlu0 %551, %v522
    %v553 = vpop.permute.xlu0 %552
    %556 = vset.pattern.permute.xlu0 0
    %557 = vperm.xlu0 %556, %v523
    %v558 = vpop.permute.xlu0 %557
    %561 = vset.pattern.permute.xlu0 0
    %562 = vperm.xlu0 %561, %v524
    %v563 = vpop.permute.xlu0 %562
    %566 = vset.pattern.permute.xlu0 0
    %567 = vperm.xlu0 %566, %v525
    %v568 = vpop.permute.xlu0 %567
    %571 = vset.pattern.permute.xlu0 0
    %572 = vperm.xlu0 %571, %v526
    %v573 = vpop.permute.xlu0 %572
    %576 = vset.pattern.permute.xlu0 0
    %577 = vperm.xlu0 %576, %v527
    %v578 = vpop.permute.xlu0 %577
    %581 = vset.pattern.permute.xlu0 0
    %582 = vperm.xlu0 %581, %v528
    %v583 = vpop.permute.xlu0 %582
    %586 = vset.pattern.permute.xlu0 0
    %587 = vperm.xlu0 %586, %v529
    %v588 = vpop.permute.xlu0 %587
    %591 = vset.pattern.permute.xlu0 0
    %592 = vperm.xlu0 %591, %v530
    %v593 = vpop.permute.xlu0 %592
    %596 = vset.pattern.permute.xlu0 0
    %597 = vperm.xlu0 %596, %v531
    %v598 = vpop.permute.xlu0 %597
    %601 = vset.pattern.permute.xlu0 0
    %602 = vperm.xlu0 %601, %v532
    %v603 = vpop.permute.xlu0 %602
    %606 = vset.pattern.permute.xlu0 0
    %607 = vperm.xlu0 %606, %v533
    %v608 = vpop.permute.xlu0 %607
    %611 = vset.pattern.permute.xlu0 0
    %612 = vperm.xlu0 %611, %v534
    %v613 = vpop.permute.xlu0 %612
    %v631 = vunpack.c.l.b16 %v503
    %v632 = vunpack.c.l.b16 %v504
    %v633 = vunpack.c.l.b16 %v505
    %v634 = vunpack.c.l.b16 %v506
    %v635 = vunpack.c.l.b16 %v507
    %v636 = vunpack.c.l.b16 %v508
    %v637 = vunpack.c.l.b16 %v509
    %v638 = vunpack.c.l.b16 %v510
    %v639 = vunpack.c.l.b16 %v511
    %v640 = vunpack.c.l.b16 %v512
    %v641 = vunpack.c.l.b16 %v513
    %v642 = vunpack.c.l.b16 %v514
    %v643 = vunpack.c.l.b16 %v515
    %v644 = vunpack.c.l.b16 %v516
    %v645 = vunpack.c.l.b16 %v517
    %v646 = vunpack.c.l.b16 %v518
    %v647 = vpack.c.b16 %v632, %v631
    %v648 = vpack.c.b16 %v634, %v633
    %v649 = vpack.c.b16 %v636, %v635
    %v650 = vpack.c.b16 %v638, %v637
    %v651 = vpack.c.b16 %v640, %v639
    %v652 = vpack.c.b16 %v642, %v641
    %v653 = vpack.c.b16 %v644, %v643
    %v654 = vpack.c.b16 %v646, %v645
    %663 = vmatprep.subr.bf16.mxu0 0
    %664 = vmatpush1.bf16.msra.mxu0 %v495
    %665 = vmatprep.subr.bf16.mxu0 0
    %666 = vmatpush1.bf16.msra.mxu0 %v496
    %667 = vmatprep.subr.bf16.mxu0 0
    %668 = vmatpush1.bf16.msra.mxu0 %v497
    %669 = vmatprep.subr.bf16.mxu0 0
    %670 = vmatpush1.bf16.msra.mxu0 %v498
    %671 = vmatprep.subr.bf16.mxu0 0
    %672 = vmatpush1.bf16.msra.mxu0 %v499
    %673 = vmatprep.subr.bf16.mxu0 0
    %674 = vmatpush1.bf16.msra.mxu0 %v500
    %675 = vmatprep.subr.bf16.mxu0 0
    %676 = vmatpush1.bf16.msra.mxu0 %v501
    %677 = vmatprep.subr.bf16.mxu0 0
    %678 = vmatpush1.bf16.msra.mxu0 %v502
    %679 = vmatprep.subr.bf16.mxu0 0
    %680 = vmatpush1.bf16.msra.mxu0 0
    %681 = vmatprep.subr.bf16.mxu0 0
    %682 = vmatpush1.bf16.msra.mxu0 0
    %683 = vmatprep.subr.bf16.mxu0 0
    %684 = vmatpush1.bf16.msra.mxu0 0
    %685 = vmatprep.subr.bf16.mxu0 0
    %686 = vmatpush1.bf16.msra.mxu0 0
    %687 = vmatprep.subr.bf16.mxu0 0
    %688 = vmatpush1.bf16.msra.mxu0 0
    %689 = vmatprep.subr.bf16.mxu0 0
    %690 = vmatpush1.bf16.msra.mxu0 0
    %691 = vmatprep.subr.bf16.mxu0 0
    %692 = vmatpush1.bf16.msra.mxu0 0
    %693 = vmatprep.subr.bf16.mxu0 0
    %694 = vmatpush1.bf16.msra.mxu0 0
    %695 = vmatprep.mubr.bf16.mxu0 0
    %696 = vmatmul.mubr.bf16.gmra.mrb[0].mxu0 %v647
    %v697 = vpop.f32.mrb[0].mxu0
    %v698 = vadd.f32 %v538, %v697
    %v699 = vpop.f32.mrb[0].mxu0
    %v700 = vpop.f32.mrb[0].mxu0
    %v701 = vadd.f32 %v543, %v700
    %v702 = vpop.f32.mrb[0].mxu0
    %703 = vmatprep.mubr.bf16.mxu0 0
    %704 = vmatmul.mubr.bf16.gmra.mrb[0].mxu0 %v648
    %v705 = vpop.f32.mrb[0].mxu0
    %v706 = vadd.f32 %v548, %v705
    %v707 = vpop.f32.mrb[0].mxu0
    %v708 = vpop.f32.mrb[0].mxu0
    %v709 = vadd.f32 %v553, %v708
    %v710 = vpop.f32.mrb[0].mxu0
    %711 = vmatprep.mubr.bf16.mxu0 0
    %712 = vmatmul.mubr.bf16.gmra.mrb[0].mxu0 %v649
    %v713 = vpop.f32.mrb[0].mxu0
    %v714 = vadd.f32 %v558, %v713
    %v715 = vpop.f32.mrb[0].mxu0
    %v716 = vpop.f32.mrb[0].mxu0
    %v717 = vadd.f32 %v563, %v716
    %v718 = vpop.f32.mrb[0].mxu0
    %719 = vmatprep.mubr.bf16.mxu0 0
    %720 = vmatmul.mubr.bf16.gmra.mrb[0].mxu0 %v650
    %v721 = vpop.f32.mrb[0].mxu0
    %v722 = vadd.f32 %v568, %v721
    %v723 = vpop.f32.mrb[0].mxu0
    %v724 = vpop.f32.mrb[0].mxu0
    %v725 = vadd.f32 %v573, %v724
    %v726 = vpop.f32.mrb[0].mxu0
    %727 = vmatprep.mubr.bf16.mxu0 0
    %728 = vmatmul.mubr.bf16.gmra.mrb[0].mxu0 %v651
    %v729 = vpop.f32.mrb[0].mxu0
    %v730 = vadd.f32 %v578, %v729
    %v731 = vpop.f32.mrb[0].mxu0
    %v732 = vpop.f32.mrb[0].mxu0
    %v733 = vadd.f32 %v583, %v732
    %v734 = vpop.f32.mrb[0].mxu0
    %735 = vmatprep.mubr.bf16.mxu0 0
    %736 = vmatmul.mubr.bf16.gmra.mrb[0].mxu0 %v652
    %v737 = vpop.f32.mrb[0].mxu0
    %v738 = vadd.f32 %v588, %v737
    %v739 = vpop.f32.mrb[0].mxu0
    %v740 = vpop.f32.mrb[0].mxu0
    %v741 = vadd.f32 %v593, %v740
    %v742 = vpop.f32.mrb[0].mxu0
    %743 = vmatprep.mubr.bf16.mxu0 0
    %744 = vmatmul.mubr.bf16.gmra.mrb[0].mxu0 %v653
    %v745 = vpop.f32.mrb[0].mxu0
    %v746 = vadd.f32 %v598, %v745
    %v747 = vpop.f32.mrb[0].mxu0
    %v748 = vpop.f32.mrb[0].mxu0
    %v749 = vadd.f32 %v603, %v748
    %v750 = vpop.f32.mrb[0].mxu0
    %751 = vmatprep.mubr.bf16.mxu0 0
    %752 = vmatmul.mubr.bf16.gmra.mrb[0].mxu0 %v654
    %v753 = vpop.f32.mrb[0].mxu0
    %v754 = vadd.f32 %v608, %v753
    %v755 = vpop.f32.mrb[0].mxu0
    %v756 = vpop.f32.mrb[0].mxu0
    %v757 = vadd.f32 %v613, %v756
    %v758 = vpop.f32.mrb[0].mxu0
    %759 = vdwg.mxu0
    %v760 = vmul.f32 %v698, 0.5
    %v761 = vmul.f32 %v701, 0.5
    %v762 = vmul.f32 %v706, 0.5
    %v763 = vmul.f32 %v709, 0.5
    %v764 = vmul.f32 %v714, 0.5
    %v765 = vmul.f32 %v717, 0.5
    %v766 = vmul.f32 %v722, 0.5
    %v767 = vmul.f32 %v725, 0.5
    %v768 = vmul.f32 %v730, 0.5
    %v769 = vmul.f32 %v733, 0.5
    %v770 = vmul.f32 %v738, 0.5
    %v771 = vmul.f32 %v741, 0.5
    %v772 = vmul.f32 %v746, 0.5
    %v773 = vmul.f32 %v749, 0.5
    %v774 = vmul.f32 %v754, 0.5
    %v775 = vmul.f32 %v757, 0.5
    %v776 = vmul.f32 %v698, 0.044715
    %v777 = vmul.f32 %v701, 0.044715
    %v778 = vmul.f32 %v706, 0.044715
    %v779 = vmul.f32 %v709, 0.044715
    %v780 = vmul.f32 %v714, 0.044715
    %v781 = vmul.f32 %v717, 0.044715
    %v782 = vmul.f32 %v722, 0.044715
    %v783 = vmul.f32 %v725, 0.044715
    %v784 = vmul.f32 %v730, 0.044715
    %v785 = vmul.f32 %v733, 0.044715
    %v786 = vmul.f32 %v738, 0.044715
    %v787 = vmul.f32 %v741, 0.044715
    %v788 = vmul.f32 %v746, 0.044715
    %v789 = vmul.f32 %v749, 0.044715
    %v790 = vmul.f32 %v754, 0.044715
    %v791 = vmul.f32 %v757, 0.044715
    %v792 = vmul.f32 %v776, %v698
    %v793 = vmul.f32 %v777, %v701
    %v794 = vmul.f32 %v778, %v706
    %v795 = vmul.f32 %v779, %v709
    %v796 = vmul.f32 %v780, %v714
    %v797 = vmul.f32 %v781, %v717
    %v798 = vmul.f32 %v782, %v722
    %v799 = vmul.f32 %v783, %v725
    %v800 = vmul.f32 %v784, %v730
    %v801 = vmul.f32 %v785, %v733
    %v802 = vmul.f32 %v786, %v738
    %v803 = vmul.f32 %v787, %v741
    %v804 = vmul.f32 %v788, %v746
    %v805 = vmul.f32 %v789, %v749
    %v806 = vmul.f32 %v790, %v754
    %v807 = vmul.f32 %v791, %v757
    %v808 = vmul.f32 %v792, %v698
    %v809 = vmul.f32 %v793, %v701
    %v810 = vmul.f32 %v794, %v706
    %v811 = vmul.f32 %v795, %v709
    %v812 = vmul.f32 %v796, %v714
    %v813 = vmul.f32 %v797, %v717
    %v814 = vmul.f32 %v798, %v722
    %v815 = vmul.f32 %v799, %v725
    %v816 = vmul.f32 %v800, %v730
    %v817 = vmul.f32 %v801, %v733
    %v818 = vmul.f32 %v802, %v738
    %v819 = vmul.f32 %v803, %v741
    %v820 = vmul.f32 %v804, %v746
    %v821 = vmul.f32 %v805, %v749
    %v822 = vmul.f32 %v806, %v754
    %v823 = vmul.f32 %v807, %v757
    %v824 = vadd.f32 %v698, %v808
    %v825 = vadd.f32 %v701, %v809
    %v826 = vadd.f32 %v706, %v810
    %v827 = vadd.f32 %v709, %v811
    %v828 = vadd.f32 %v714, %v812
    %v829 = vadd.f32 %v717, %v813
    %v830 = vadd.f32 %v722, %v814
    %v831 = vadd.f32 %v725, %v815
    %v832 = vadd.f32 %v730, %v816
    %v833 = vadd.f32 %v733, %v817
    %v834 = vadd.f32 %v738, %v818
    %v835 = vadd.f32 %v741, %v819
    %v836 = vadd.f32 %v746, %v820
    %v837 = vadd.f32 %v749, %v821
    %v838 = vadd.f32 %v754, %v822
    %v839 = vadd.f32 %v757, %v823
    %v840 = vmul.f32 %v824, 0.7978846
    %v841 = vmul.f32 %v825, 0.7978846
    %v842 = vmul.f32 %v826, 0.7978846
    %v843 = vmul.f32 %v827, 0.7978846
    %v844 = vmul.f32 %v828, 0.7978846
    %v845 = vmul.f32 %v829, 0.7978846
    %v846 = vmul.f32 %v830, 0.7978846
    %v847 = vmul.f32 %v831, 0.7978846
    %v848 = vmul.f32 %v832, 0.7978846
    %v849 = vmul.f32 %v833, 0.7978846
    %v850 = vmul.f32 %v834, 0.7978846
    %v851 = vmul.f32 %v835, 0.7978846
    %v852 = vmul.f32 %v836, 0.7978846
    %v853 = vmul.f32 %v837, 0.7978846
    %v854 = vmul.f32 %v838, 0.7978846
    %v855 = vmul.f32 %v839, 0.7978846
    %v856 = vtanh.pop %v840
    %v857 = vtanh.pop %v841
    %v858 = vtanh.pop %v842
    %v859 = vtanh.pop %v843
    %v860 = vtanh.pop %v844
    %v861 = vtanh.pop %v845
    %v862 = vtanh.pop %v846
    %v863 = vtanh.pop %v847
    %v864 = vtanh.pop %v848
    %v865 = vtanh.pop %v849
    %v866 = vtanh.pop %v850
    %v867 = vtanh.pop %v851
    %v868 = vtanh.pop %v852
    %v869 = vtanh.pop %v853
    %v870 = vtanh.pop %v854
    %v871 = vtanh.pop %v855
    %v872 = vadd.f32 %v856, 1.0
    %v873 = vadd.f32 %v857, 1.0
    %v874 = vadd.f32 %v858, 1.0
    %v875 = vadd.f32 %v859, 1.0
    %v876 = vadd.f32 %v860, 1.0
    %v877 = vadd.f32 %v861, 1.0
    %v878 = vadd.f32 %v862, 1.0
    %v879 = vadd.f32 %v863, 1.0
    %v880 = vadd.f32 %v864, 1.0
    %v881 = vadd.f32 %v865, 1.0
    %v882 = vadd.f32 %v866, 1.0
    %v883 = vadd.f32 %v867, 1.0
    %v884 = vadd.f32 %v868, 1.0
    %v885 = vadd.f32 %v869, 1.0
    %v886 = vadd.f32 %v870, 1.0
    %v887 = vadd.f32 %v871, 1.0
    %v888 = vmul.f32 %v760, %v872
    %v889 = vmul.f32 %v761, %v873
    %v890 = vmul.f32 %v762, %v874
    %v891 = vmul.f32 %v763, %v875
    %v892 = vmul.f32 %v764, %v876
    %v893 = vmul.f32 %v765, %v877
    %v894 = vmul.f32 %v766, %v878
    %v895 = vmul.f32 %v767, %v879
    %v896 = vmul.f32 %v768, %v880
    %v897 = vmul.f32 %v769, %v881
    %v898 = vmul.f32 %v770, %v882
    %v899 = vmul.f32 %v771, %v883
    %v900 = vmul.f32 %v772, %v884
    %v901 = vmul.f32 %v773, %v885
    %v902 = vmul.f32 %v774, %v886
    %v903 = vmul.f32 %v775, %v887
    %v904 = vld [vmem:[%s5] sm:$0xff]
    %v905 = vld [vmem:[%s5 + $0x8] sm:$0xff]
    %v906 = vld [vmem:[%s5 + $0x10] sm:$0xff]
    %v907 = vld [vmem:[%s5 + $0x18] sm:$0xff]
    %v908 = vld [vmem:[%s5 + $0x20] sm:$0xff]
    %v909 = vld [vmem:[%s5 + $0x28] sm:$0xff]
    %v910 = vld [vmem:[%s5 + $0x30] sm:$0xff]
    %v911 = vld [vmem:[%s5 + $0x38] sm:$0xff]
    %v912 = vld [vmem:[%s5 + $0x40] sm:$0xff]
    %v913 = vld [vmem:[%s5 + $0x48] sm:$0xff]
    %v914 = vld [vmem:[%s5 + $0x50] sm:$0xff]
    %v915 = vld [vmem:[%s5 + $0x58] sm:$0xff]
    %v916 = vld [vmem:[%s5 + $0x60] sm:$0xff]
    %v917 = vld [vmem:[%s5 + $0x68] sm:$0xff]
    %v918 = vld [vmem:[%s5 + $0x70] sm:$0xff]
    %v919 = vld [vmem:[%s5 + $0x78] sm:$0xff]
    %v920 = vld [vmem:[#allocation2] sm:$0x1]
    %922 = vset.pattern.permute.xlu0 0
    %923 = vperm.xlu0 %922, %v904
    %v924 = vpop.permute.xlu0 %923
    %927 = vset.pattern.permute.xlu0 0
    %928 = vperm.xlu0 %927, %v905
    %v929 = vpop.permute.xlu0 %928
    %932 = vset.pattern.permute.xlu0 0
    %933 = vperm.xlu0 %932, %v906
    %v934 = vpop.permute.xlu0 %933
    %937 = vset.pattern.permute.xlu0 0
    %938 = vperm.xlu0 %937, %v907
    %v939 = vpop.permute.xlu0 %938
    %942 = vset.pattern.permute.xlu0 0
    %943 = vperm.xlu0 %942, %v908
    %v944 = vpop.permute.xlu0 %943
    %947 = vset.pattern.permute.xlu0 0
    %948 = vperm.xlu0 %947, %v909
    %v949 = vpop.permute.xlu0 %948
    %952 = vset.pattern.permute.xlu0 0
    %953 = vperm.xlu0 %952, %v910
    %v954 = vpop.permute.xlu0 %953
    %957 = vset.pattern.permute.xlu0 0
    %958 = vperm.xlu0 %957, %v911
    %v959 = vpop.permute.xlu0 %958
    %962 = vset.pattern.permute.xlu0 0
    %963 = vperm.xlu0 %962, %v912
    %v964 = vpop.permute.xlu0 %963
    %967 = vset.pattern.permute.xlu0 0
    %968 = vperm.xlu0 %967, %v913
    %v969 = vpop.permute.xlu0 %968
    %972 = vset.pattern.permute.xlu0 0
    %973 = vperm.xlu0 %972, %v914
    %v974 = vpop.permute.xlu0 %973
    %977 = vset.pattern.permute.xlu0 0
    %978 = vperm.xlu0 %977, %v915
    %v979 = vpop.permute.xlu0 %978
    %982 = vset.pattern.permute.xlu0 0
    %983 = vperm.xlu0 %982, %v916
    %v984 = vpop.permute.xlu0 %983
    %987 = vset.pattern.permute.xlu0 0
    %988 = vperm.xlu0 %987, %v917
    %v989 = vpop.permute.xlu0 %988
    %992 = vset.pattern.permute.xlu0 0
    %993 = vperm.xlu0 %992, %v918
    %v994 = vpop.permute.xlu0 %993
    %997 = vset.pattern.permute.xlu0 0
    %998 = vperm.xlu0 %997, %v919
    %v999 = vpop.permute.xlu0 %998
    %v1001 = vmul.f32 %v888, %v924
    %v1002 = vmul.f32 %v889, %v929
    %v1003 = vmul.f32 %v890, %v934
    %v1004 = vmul.f32 %v891, %v939
    %v1005 = vmul.f32 %v892, %v944
    %v1006 = vmul.f32 %v893, %v949
    %v1007 = vmul.f32 %v894, %v954
    %v1008 = vmul.f32 %v895, %v959
    %v1009 = vmul.f32 %v896, %v964
    %v1010 = vmul.f32 %v897, %v969
    %v1011 = vmul.f32 %v898, %v974
    %v1012 = vmul.f32 %v899, %v979
    %v1013 = vmul.f32 %v900, %v984
    %v1014 = vmul.f32 %v901, %v989
    %v1015 = vmul.f32 %v902, %v994
    %v1016 = vmul.f32 %v903, %v999
    %v1017 = vadd.f32 %v1001, %v1002
    %v1018 = vadd.f32 %v1017, %v1003
    %v1019 = vadd.f32 %v1018, %v1004
    %v1020 = vadd.f32 %v1019, %v1005
    %v1021 = vadd.f32 %v1020, %v1006
    %v1022 = vadd.f32 %v1021, %v1007
    %v1023 = vadd.f32 %v1022, %v1008
    %v1024 = vadd.f32 %v1023, %v1009
    %v1025 = vadd.f32 %v1024, %v1010
    %v1026 = vadd.f32 %v1025, %v1011
    %v1027 = vadd.f32 %v1026, %v1012
    %v1028 = vadd.f32 %v1027, %v1013
    %v1029 = vadd.f32 %v1028, %v1014
    %v1030 = vadd.f32 %v1029, %v1015
    %v1031 = vadd.f32 %v1030, %v1016
    %v1032 = vrot.slane %v1031, 4
    %v1033 = vadd.f32 %v1031, %v1032
    %v1034 = vrot.slane %v1033, 2
    %v1035 = vadd.f32 %v1033, %v1034
    %v1036 = vrot.slane %v1035, 1
    %v1037 = vadd.f32 %v1035, %v1036
    %1039 = vset.pattern.permute.xlu0 0
    %1040 = vperm.xlu0 %1039, %v920
    %v1041 = vpop.permute.xlu0 %1040
    %v1043 = vlaneseq
    %v1044 = vshrl.u32 %v1043, 7
    %v1045 = vsub.s32 0, %v1044
    %v1046 = vrot.slane %v1041, %v1045
    %v1047 = vadd.f32 %v1037, %v1046
    %1048 = vst [vmem:[#allocation3] sm:$0x1] %v1047
    // Predicated region
    $region30: #{tpu_custom_call.1} parent=1 // pred_check
      _
    $region31: #{tpu_custom_call.1} parent=1 // pred_check_branch
      %1050 = sbr.rel (0) target = $region33
    $region32: #{tpu_custom_call.1} parent=1 // pred_region
      %s1052 = ssub.s32 16, 16
      %1053 = vsyncadd [#allocation4], %s1052
      %s1055 = sshll.u32 [#allocation3], 4
      %s1056 = int_to_ptr.vmem [resolvable:$true] %s1055
      %1058 = dma.vmem_to_hbm [thread:$0]  %s1056, 16, %s7, [#allocation4]
    $region33: #{tpu_custom_call.1} parent=1 // pred_fallthru
      _
    // Predicated region
    $region34: #{tpu_custom_call.1} parent=1 // pred_check
      _
    $region35: #{tpu_custom_call.1} parent=1 // pred_check_branch
      %1060 = sbr.rel (0) target = $region37
    $region36: #{tpu_custom_call.1} parent=1 // pred_region
      %1061 = dma.done [#allocation4], 16
    $region37: #{tpu_custom_call.1} parent=1 // pred_fallthru
      _
    %1062 = vsyncpa [#allocation4], 1

// kernel: tpu_custom_call.1
$region0: #{tpu_custom_call.1}
  #allocation0 [shape = 'u32[]', space=smem, size = 0x4, offset = 0x4, fixed_abs, tag = 'smem constant byte address 0x4 - core index']
  #allocation1 [shape = 'u32[144,128]{1,0:T(1,128)}', space=vmem, size = 0x12000, scoped, tag = 'internal scratch']
  #allocation2 [shape = 'f32[1,1]{1,0:T(1,128)S(1)}', space=vmem, size = 0x200, scoped, tag = 'scoped memory for tpu_custom_call.1']
  %s0 = inlined_call_operand.vmem [shape: bf16[128,128], index: 0, kind: input, shape index: {}]
  %s1 = inlined_call_operand.vmem [shape: bf16[128,128], index: 1, kind: input, shape index: {}]
  %s2 = inlined_call_operand.vmem [shape: f32[128,1], index: 2, kind: input, shape index: {}]
  %s3 = inlined_call_operand.vmem [shape: bf16[128,128], index: 3, kind: input, shape index: {}]
  %s4 = inlined_call_operand.vmem [shape: f32[128,1], index: 4, kind: input, shape index: {}]
  %s5 = inlined_call_operand.vmem [shape: f32[128,1], index: 5, kind: input, shape index: {}]
  %s6 = inlined_call_operand.<no memory space> [shape: f32[1,1], index: 6, kind: input, shape index: {}]
  %s7 = inlined_call_operand.hbm [shape: f32[1,128], index: 7, kind: output, shape index: {}]
  %s8 = sld [smem:[#allocation0]]
  $region38: #{tpu_custom_call.1} parent=0
    _
  %s10 = ssub.s32 1, %s8
  %s11 = scalar_select 0, %s10, %s8
  %v12 = vstv %s6
  %13 = vst [vmem:[#allocation2] sm:$0x1] %v12
  $region1: #{tpu_custom_call.1} parent=0
    #allocation3 [shape = 'u8[512]{0}', space=vmem, size = 0x400, scoped, tag = 'output window, operand 0, single buffered']
    #allocation4 [shape = 's32[1]{0}', space=sflag, size = 0x4, scoped, tag = 'scoped memory for tpu_custom_call.1']
    %14 = vsyncpa [#allocation4], 0
    // Predicated region
    $region2: #{tpu_custom_call.1} parent=1 // pred_check
      _
    $region3: #{tpu_custom_call.1} parent=1 // pred_check_branch
      %16 = sbr.rel (0) target = $region5
    $region4: #{tpu_custom_call.1} parent=1 // pred_region
      _
    $region5: #{tpu_custom_call.1} parent=1 // pred_fallthru
      _
    // Predicated region
    $region6: #{tpu_custom_call.1} parent=1 // pred_check
      _
    $region7: #{tpu_custom_call.1} parent=1 // pred_check_branch
      %18 = sbr.rel (0) target = $region9
    $region8: #{tpu_custom_call.1} parent=1 // pred_region
      _
    $region9: #{tpu_custom_call.1} parent=1 // pred_fallthru
      _
    // Predicated region
    $region10: #{tpu_custom_call.1} parent=1 // pred_check
      _
    $region11: #{tpu_custom_call.1} parent=1 // pred_check_branch
      %20 = sbr.rel (0) target = $region13
    $region12: #{tpu_custom_call.1} parent=1 // pred_region
      _
    $region13: #{tpu_custom_call.1} parent=1 // pred_fallthru
      _
    // Predicated region
    $region14: #{tpu_custom_call.1} parent=1 // pred_check
      _
    $region15: #{tpu_custom_call.1} parent=1 // pred_check_branch
      %22 = sbr.rel (0) target = $region17
    $region16: #{tpu_custom_call.1} parent=1 // pred_region
      _
    $region17: #{tpu_custom_call.1} parent=1 // pred_fallthru
      _
    // Predicated region
    $region18: #{tpu_custom_call.1} parent=1 // pred_check
      _
    $region19: #{tpu_custom_call.1} parent=1 // pred_check_branch
      %24 = sbr.rel (0) target = $region21
    $region20: #{tpu_custom_call.1} parent=1 // pred_region
      _
    $region21: #{tpu_custom_call.1} parent=1 // pred_fallthru
      _
    // Predicated region
    $region22: #{tpu_custom_call.1} parent=1 // pred_check
      _
    $region23: #{tpu_custom_call.1} parent=1 // pred_check_branch
      %26 = sbr.rel (0) target = $region25
    $region24: #{tpu_custom_call.1} parent=1 // pred_region
      _
    $region25: #{tpu_custom_call.1} parent=1 // pred_fallthru
      _
    // Predicated region
    $region26: #{tpu_custom_call.1} parent=1 // pred_check
      _
    $region27: #{tpu_custom_call.1} parent=1 // pred_check_branch
      %28 = sbr.rel (0) target = $region29
    $region28: #{tpu_custom_call.1} parent=1 // pred_region
      _
    $region29: #{tpu_custom_call.1} parent=1 // pred_fallthru
      _
    %v30 = vld [vmem:[%s1] sm:$0xf]
    %v31 = vld [vmem:[%s1 + $0x4] sm:$0xf]
    %v32 = vld [vmem:[%s1 + $0x8] sm:$0xf]
    %v33 = vld [vmem:[%s1 + $0xc] sm:$0xf]
    %v34 = vld [vmem:[%s1 + $0x10] sm:$0xf]
    %v35 = vld [vmem:[%s1 + $0x14] sm:$0xf]
    %v36 = vld [vmem:[%s1 + $0x18] sm:$0xf]
    %v37 = vld [vmem:[%s1 + $0x1c] sm:$0xf]
    %v38 = vld [vmem:[%s1 + $0x20] sm:$0xf]
    %v39 = vld [vmem:[%s1 + $0x24] sm:$0xf]
    %v40 = vld [vmem:[%s1 + $0x28] sm:$0xf]
    %v41 = vld [vmem:[%s1 + $0x2c] sm:$0xf]
    %v42 = vld [vmem:[%s1 + $0x30] sm:$0xf]
    %v43 = vld [vmem:[%s1 + $0x34] sm:$0xf]
    %v44 = vld [vmem:[%s1 + $0x38] sm:$0xf]
    %v45 = vld [vmem:[%s1 + $0x3c] sm:$0xf]
    %v46 = vld [vmem:[%s2] sm:$0xff]
    %v47 = vld [vmem:[%s2 + $0x8] sm:$0xff]
    %v48 = vld [vmem:[%s2 + $0x10] sm:$0xff]
    %v49 = vld [vmem:[%s2 + $0x18] sm:$0xff]
    %v50 = vld [vmem:[%s2 + $0x20] sm:$0xff]
    %v51 = vld [vmem:[%s2 + $0x28] sm:$0xff]
    %v52 = vld [vmem:[%s2 + $0x30] sm:$0xff]
    %v53 = vld [vmem:[%s2 + $0x38] sm:$0xff]
    %v54 = vld [vmem:[%s2 + $0x40] sm:$0xff]
    %v55 = vld [vmem:[%s2 + $0x48] sm:$0xff]
    %v56 = vld [vmem:[%s2 + $0x50] sm:$0xff]
    %v57 = vld [vmem:[%s2 + $0x58] sm:$0xff]
    %v58 = vld [vmem:[%s2 + $0x60] sm:$0xff]
    %v59 = vld [vmem:[%s2 + $0x68] sm:$0xff]
    %v60 = vld [vmem:[%s2 + $0x70] sm:$0xff]
    %v61 = vld [vmem:[%s2 + $0x78] sm:$0xff]
    %v62 = vld [vmem:[%s0] sm:$0xf]
    %v63 = vld [vmem:[%s0 + $0x4] sm:$0xf]
    %v64 = vld [vmem:[%s0 + $0x8] sm:$0xf]
    %v65 = vld [vmem:[%s0 + $0xc] sm:$0xf]
    %v66 = vld [vmem:[%s0 + $0x10] sm:$0xf]
    %v67 = vld [vmem:[%s0 + $0x14] sm:$0xf]
    %v68 = vld [vmem:[%s0 + $0x18] sm:$0xf]
    %v69 = vld [vmem:[%s0 + $0x1c] sm:$0xf]
    %v70 = vld [vmem:[%s0 + $0x20] sm:$0xf]
    %v71 = vld [vmem:[%s0 + $0x24] sm:$0xf]
    %v72 = vld [vmem:[%s0 + $0x28] sm:$0xf]
    %v73 = vld [vmem:[%s0 + $0x2c] sm:$0xf]
    %v74 = vld [vmem:[%s0 + $0x30] sm:$0xf]
    %v75 = vld [vmem:[%s0 + $0x34] sm:$0xf]
    %v76 = vld [vmem:[%s0 + $0x38] sm:$0xf]
    %v77 = vld [vmem:[%s0 + $0x3c] sm:$0xf]
    %79 = vset.pattern.permute.xlu0 0
    %80 = vperm.xlu0 %79, %v46
    %v81 = vpop.permute.xlu0 %80
    %84 = vset.pattern.permute.xlu0 0
    %85 = vperm.xlu0 %84, %v47
    %v86 = vpop.permute.xlu0 %85
    %89 = vset.pattern.permute.xlu0 0
    %90 = vperm.xlu0 %89, %v48
    %v91 = vpop.permute.xlu0 %90
    %94 = vset.pattern.permute.xlu0 0
    %95 = vperm.xlu0 %94, %v49
    %v96 = vpop.permute.xlu0 %95
    %99 = vset.pattern.permute.xlu0 0
    %100 = vperm.xlu0 %99, %v50
    %v101 = vpop.permute.xlu0 %100
    %104 = vset.pattern.permute.xlu0 0
    %105 = vperm.xlu0 %104, %v51
    %v106 = vpop.permute.xlu0 %105
    %109 = vset.pattern.permute.xlu0 0
    %110 = vperm.xlu0 %109, %v52
    %v111 = vpop.permute.xlu0 %110
    %114 = vset.pattern.permute.xlu0 0
    %115 = vperm.xlu0 %114, %v53
    %v116 = vpop.permute.xlu0 %115
    %119 = vset.pattern.permute.xlu0 0
    %120 = vperm.xlu0 %119, %v54
    %v121 = vpop.permute.xlu0 %120
    %124 = vset.pattern.permute.xlu0 0
    %125 = vperm.xlu0 %124, %v55
    %v126 = vpop.permute.xlu0 %125
    %129 = vset.pattern.permute.xlu0 0
    %130 = vperm.xlu0 %129, %v56
    %v131 = vpop.permute.xlu0 %130
    %134 = vset.pattern.permute.xlu0 0
    %135 = vperm.xlu0 %134, %v57
    %v136 = vpop.permute.xlu0 %135
    %139 = vset.pattern.permute.xlu0 0
    %140 = vperm.xlu0 %139, %v58
    %v141 = vpop.permute.xlu0 %140
    %144 = vset.pattern.permute.xlu0 0
    %145 = vperm.xlu0 %144, %v59
    %v146 = vpop.permute.xlu0 %145
    %149 = vset.pattern.permute.xlu0 0
    %150 = vperm.xlu0 %149, %v60
    %v151 = vpop.permute.xlu0 %150
    %154 = vset.pattern.permute.xlu0 0
    %155 = vperm.xlu0 %154, %v61
    %v156 = vpop.permute.xlu0 %155
    %v174 = vunpack.c.l.b16 %v30
    %v175 = vunpack.c.l.b16 %v31
    %v176 = vunpack.c.l.b16 %v32
    %v177 = vunpack.c.l.b16 %v33
    %v178 = vunpack.c.l.b16 %v34
    %v179 = vunpack.c.l.b16 %v35
    %v180 = vunpack.c.l.b16 %v36
    %v181 = vunpack.c.l.b16 %v37
    %v182 = vunpack.c.l.b16 %v38
    %v183 = vunpack.c.l.b16 %v39
    %v184 = vunpack.c.l.b16 %v40
    %v185 = vunpack.c.l.b16 %v41
    %v186 = vunpack.c.l.b16 %v42
    %v187 = vunpack.c.l.b16 %v43
    %v188 = vunpack.c.l.b16 %v44
    %v189 = vunpack.c.l.b16 %v45
    %v190 = vpack.c.b16 %v175, %v174
    %v191 = vpack.c.b16 %v177, %v176
    %v192 = vpack.c.b16 %v179, %v178
    %v193 = vpack.c.b16 %v181, %v180
    %v194 = vpack.c.b16 %v183, %v182
    %v195 = vpack.c.b16 %v185, %v184
    %v196 = vpack.c.b16 %v187, %v186
    %v197 = vpack.c.b16 %v189, %v188
    %v222 = vunpack.c.l.b16 %v62
    %v223 = vunpack.c.l.b16 %v63
    %v224 = vunpack.c.l.b16 %v64
    %v225 = vunpack.c.l.b16 %v65
    %v226 = vunpack.c.l.b16 %v66
    %v227 = vunpack.c.l.b16 %v67
    %v228 = vunpack.c.l.b16 %v68
    %v229 = vunpack.c.l.b16 %v69
    %v230 = vunpack.c.l.b16 %v70
    %v231 = vunpack.c.l.b16 %v71
    %v232 = vunpack.c.l.b16 %v72
    %v233 = vunpack.c.l.b16 %v73
    %v234 = vunpack.c.l.b16 %v74
    %v235 = vunpack.c.l.b16 %v75
    %v236 = vunpack.c.l.b16 %v76
    %v237 = vunpack.c.l.b16 %v77
    %v238 = vpack.c.b16 %v223, %v222
    %v239 = vpack.c.b16 %v225, %v224
    %v240 = vpack.c.b16 %v227, %v226
    %v241 = vpack.c.b16 %v229, %v228
    %v242 = vpack.c.b16 %v231, %v230
    %v243 = vpack.c.b16 %v233, %v232
    %v244 = vpack.c.b16 %v235, %v234
    %v245 = vpack.c.b16 %v237, %v236
    %254 = vmatprep.subr.bf16.mxu0 0
    %255 = vmatpush1.bf16.xpose.msra.mxu0 %v238
    %256 = vmatprep.subr.bf16.mxu0 0
    %257 = vmatpush1.bf16.xpose.msra.mxu0 %v239
    %258 = vmatprep.subr.bf16.mxu0 0
    %259 = vmatpush1.bf16.xpose.msra.mxu0 %v240
    %260 = vmatprep.subr.bf16.mxu0 0
    %261 = vmatpush1.bf16.xpose.msra.mxu0 %v241
    %262 = vmatprep.subr.bf16.mxu0 0
    %263 = vmatpush1.bf16.xpose.msra.mxu0 %v242
    %264 = vmatprep.subr.bf16.mxu0 0
    %265 = vmatpush1.bf16.xpose.msra.mxu0 %v243
    %266 = vmatprep.subr.bf16.mxu0 0
    %267 = vmatpush1.bf16.xpose.msra.mxu0 %v244
    %268 = vmatprep.subr.bf16.mxu0 0
    %269 = vmatpush1.bf16.xpose.msra.mxu0 %v245
    %270 = vmatprep.subr.bf16.mxu0 0
    %271 = vmatpush1.bf16.xpose.msra.mxu0 0
    %272 = vmatprep.subr.bf16.mxu0 0
    %273 = vmatpush1.bf16.xpose.msra.mxu0 0
    %274 = vmatprep.subr.bf16.mxu0 0
    %275 = vmatpush1.bf16.xpose.msra.mxu0 0
    %276 = vmatprep.subr.bf16.mxu0 0
    %277 = vmatpush1.bf16.xpose.msra.mxu0 0
    %278 = vmatprep.subr.bf16.mxu0 0
    %279 = vmatpush1.bf16.xpose.msra.mxu0 0
    %280 = vmatprep.subr.bf16.mxu0 0
    %281 = vmatpush1.bf16.xpose.msra.mxu0 0
    %282 = vmatprep.subr.bf16.mxu0 0
    %283 = vmatpush1.bf16.xpose.msra.mxu0 0
    %284 = vmatprep.subr.bf16.mxu0 0
    %285 = vmatpush1.bf16.xpose.msra.mxu0 0
    %286 = vmatprep.mubr.bf16.mxu0 0
    %287 = vmatmul.mubr.bf16.gmra.mrb[0].mxu0 %v190
    %v288 = vpop.f32.mrb[0].mxu0
    %v289 = vadd.f32 %v81, %v288
    %v290 = vpop.f32.mrb[0].mxu0
    %v291 = vpop.f32.mrb[0].mxu0
    %v292 = vadd.f32 %v86, %v291
    %v293 = vpop.f32.mrb[0].mxu0
    %294 = vmatprep.mubr.bf16.mxu0 0
    %295 = vmatmul.mubr.bf16.gmra.mrb[0].mxu0 %v191
    %v296 = vpop.f32.mrb[0].mxu0
    %v297 = vadd.f32 %v91, %v296
    %v298 = vpop.f32.mrb[0].mxu0
    %v299 = vpop.f32.mrb[0].mxu0
    %v300 = vadd.f32 %v96, %v299
    %v301 = vpop.f32.mrb[0].mxu0
    %302 = vmatprep.mubr.bf16.mxu0 0
    %303 = vmatmul.mubr.bf16.gmra.mrb[0].mxu0 %v192
    %v304 = vpop.f32.mrb[0].mxu0
    %v305 = vadd.f32 %v101, %v304
    %v306 = vpop.f32.mrb[0].mxu0
    %v307 = vpop.f32.mrb[0].mxu0
    %v308 = vadd.f32 %v106, %v307
    %v309 = vpop.f32.mrb[0].mxu0
    %310 = vmatprep.mubr.bf16.mxu0 0
    %311 = vmatmul.mubr.bf16.gmra.mrb[0].mxu0 %v193
    %v312 = vpop.f32.mrb[0].mxu0
    %v313 = vadd.f32 %v111, %v312
    %v314 = vpop.f32.mrb[0].mxu0
    %v315 = vpop.f32.mrb[0].mxu0
    %v316 = vadd.f32 %v116, %v315
    %v317 = vpop.f32.mrb[0].mxu0
    %318 = vmatprep.mubr.bf16.mxu0 0
    %319 = vmatmul.mubr.bf16.gmra.mrb[0].mxu0 %v194
    %v320 = vpop.f32.mrb[0].mxu0
    %v321 = vadd.f32 %v121, %v320
    %v322 = vpop.f32.mrb[0].mxu0
    %v323 = vpop.f32.mrb[0].mxu0
    %v324 = vadd.f32 %v126, %v323
    %v325 = vpop.f32.mrb[0].mxu0
    %326 = vmatprep.mubr.bf16.mxu0 0
    %327 = vmatmul.mubr.bf16.gmra.mrb[0].mxu0 %v195
    %v328 = vpop.f32.mrb[0].mxu0
    %v329 = vadd.f32 %v131, %v328
    %v330 = vpop.f32.mrb[0].mxu0
    %v331 = vpop.f32.mrb[0].mxu0
    %v332 = vadd.f32 %v136, %v331
    %v333 = vpop.f32.mrb[0].mxu0
    %334 = vmatprep.mubr.bf16.mxu0 0
    %335 = vmatmul.mubr.bf16.gmra.mrb[0].mxu0 %v196
    %v336 = vpop.f32.mrb[0].mxu0
    %v337 = vadd.f32 %v141, %v336
    %v338 = vpop.f32.mrb[0].mxu0
    %v339 = vpop.f32.mrb[0].mxu0
    %v340 = vadd.f32 %v146, %v339
    %v341 = vpop.f32.mrb[0].mxu0
    %342 = vmatprep.mubr.bf16.mxu0 0
    %343 = vmatmul.mubr.bf16.gmra.mrb[0].mxu0 %v197
    %v344 = vpop.f32.mrb[0].mxu0
    %v345 = vadd.f32 %v151, %v344
    %v346 = vpop.f32.mrb[0].mxu0
    %v347 = vpop.f32.mrb[0].mxu0
    %v348 = vadd.f32 %v156, %v347
    %v349 = vpop.f32.mrb[0].mxu0
    %350 = vdwg.mxu0
    %v351 = vmul.f32 %v289, 0.5
    %v352 = vmul.f32 %v292, 0.5
    %v353 = vmul.f32 %v297, 0.5
    %v354 = vmul.f32 %v300, 0.5
    %v355 = vmul.f32 %v305, 0.5
    %v356 = vmul.f32 %v308, 0.5
    %v357 = vmul.f32 %v313, 0.5
    %v358 = vmul.f32 %v316, 0.5
    %v359 = vmul.f32 %v321, 0.5
    %v360 = vmul.f32 %v324, 0.5
    %v361 = vmul.f32 %v329, 0.5
    %v362 = vmul.f32 %v332, 0.5
    %v363 = vmul.f32 %v337, 0.5
    %v364 = vmul.f32 %v340, 0.5
    %v365 = vmul.f32 %v345, 0.5
    %v366 = vmul.f32 %v348, 0.5
    %v367 = vmul.f32 %v289, 0.044715
    %v368 = vmul.f32 %v292, 0.044715
    %v369 = vmul.f32 %v297, 0.044715
    %v370 = vmul.f32 %v300, 0.044715
    %v371 = vmul.f32 %v305, 0.044715
    %v372 = vmul.f32 %v308, 0.044715
    %v373 = vmul.f32 %v313, 0.044715
    %v374 = vmul.f32 %v316, 0.044715
    %v375 = vmul.f32 %v321, 0.044715
    %v376 = vmul.f32 %v324, 0.044715
    %v377 = vmul.f32 %v329, 0.044715
    %v378 = vmul.f32 %v332, 0.044715
    %v379 = vmul.f32 %v337, 0.044715
    %v380 = vmul.f32 %v340, 0.044715
    %v381 = vmul.f32 %v345, 0.044715
    %v382 = vmul.f32 %v348, 0.044715
    %v383 = vmul.f32 %v367, %v289
    %v384 = vmul.f32 %v368, %v292
    %v385 = vmul.f32 %v369, %v297
    %v386 = vmul.f32 %v370, %v300
    %v387 = vmul.f32 %v371, %v305
    %v388 = vmul.f32 %v372, %v308
    %v389 = vmul.f32 %v373, %v313
    %v390 = vmul.f32 %v374, %v316
    %v391 = vmul.f32 %v375, %v321
    %v392 = vmul.f32 %v376, %v324
    %v393 = vmul.f32 %v377, %v329
    %v394 = vmul.f32 %v378, %v332
    %v395 = vmul.f32 %v379, %v337
    %v396 = vmul.f32 %v380, %v340
    %v397 = vmul.f32 %v381, %v345
    %v398 = vmul.f32 %v382, %v348
    %v399 = vmul.f32 %v383, %v289
    %v400 = vmul.f32 %v384, %v292
    %v401 = vmul.f32 %v385, %v297
    %v402 = vmul.f32 %v386, %v300
    %v403 = vmul.f32 %v387, %v305
    %v404 = vmul.f32 %v388, %v308
    %v405 = vmul.f32 %v389, %v313
    %v406 = vmul.f32 %v390, %v316
    %v407 = vmul.f32 %v391, %v321
    %v408 = vmul.f32 %v392, %v324
    %v409 = vmul.f32 %v393, %v329
    %v410 = vmul.f32 %v394, %v332
    %v411 = vmul.f32 %v395, %v337
    %v412 = vmul.f32 %v396, %v340
    %v413 = vmul.f32 %v397, %v345
    %v414 = vmul.f32 %v398, %v348
    %v415 = vadd.f32 %v289, %v399
    %v416 = vadd.f32 %v292, %v400
    %v417 = vadd.f32 %v297, %v401
    %v418 = vadd.f32 %v300, %v402
    %v419 = vadd.f32 %v305, %v403
    %v420 = vadd.f32 %v308, %v404
    %v421 = vadd.f32 %v313, %v405
    %v422 = vadd.f32 %v316, %v406
    %v423 = vadd.f32 %v321, %v407
    %v424 = vadd.f32 %v324, %v408
    %v425 = vadd.f32 %v329, %v409
    %v426 = vadd.f32 %v332, %v410
    %v427 = vadd.f32 %v337, %v411
    %v428 = vadd.f32 %v340, %v412
    %v429 = vadd.f32 %v345, %v413
    %v430 = vadd.f32 %v348, %v414
    %v431 = vmul.f32 %v415, 0.7978846
    %v432 = vmul.f32 %v416, 0.7978846
    %v433 = vmul.f32 %v417, 0.7978846
    %v434 = vmul.f32 %v418, 0.7978846
    %v435 = vmul.f32 %v419, 0.7978846
    %v436 = vmul.f32 %v420, 0.7978846
    %v437 = vmul.f32 %v421, 0.7978846
    %v438 = vmul.f32 %v422, 0.7978846
    %v439 = vmul.f32 %v423, 0.7978846
    %v440 = vmul.f32 %v424, 0.7978846
    %v441 = vmul.f32 %v425, 0.7978846
    %v442 = vmul.f32 %v426, 0.7978846
    %v443 = vmul.f32 %v427, 0.7978846
    %v444 = vmul.f32 %v428, 0.7978846
    %v445 = vmul.f32 %v429, 0.7978846
    %v446 = vmul.f32 %v430, 0.7978846
    %v447 = vtanh.pop %v431
    %v448 = vtanh.pop %v432
    %v449 = vtanh.pop %v433
    %v450 = vtanh.pop %v434
    %v451 = vtanh.pop %v435
    %v452 = vtanh.pop %v436
    %v453 = vtanh.pop %v437
    %v454 = vtanh.pop %v438
    %v455 = vtanh.pop %v439
    %v456 = vtanh.pop %v440
    %v457 = vtanh.pop %v441
    %v458 = vtanh.pop %v442
    %v459 = vtanh.pop %v443
    %v460 = vtanh.pop %v444
    %v461 = vtanh.pop %v445
    %v462 = vtanh.pop %v446
    %v463 = vadd.f32 %v447, 1.0
    %v464 = vadd.f32 %v448, 1.0
    %v465 = vadd.f32 %v449, 1.0
    %v466 = vadd.f32 %v450, 1.0
    %v467 = vadd.f32 %v451, 1.0
    %v468 = vadd.f32 %v452, 1.0
    %v469 = vadd.f32 %v453, 1.0
    %v470 = vadd.f32 %v454, 1.0
    %v471 = vadd.f32 %v455, 1.0
    %v472 = vadd.f32 %v456, 1.0
    %v473 = vadd.f32 %v457, 1.0
    %v474 = vadd.f32 %v458, 1.0
    %v475 = vadd.f32 %v459, 1.0
    %v476 = vadd.f32 %v460, 1.0
    %v477 = vadd.f32 %v461, 1.0
    %v478 = vadd.f32 %v462, 1.0
    %v479 = vmul.f32 %v351, %v463
    %v480 = vmul.f32 %v352, %v464
    %v481 = vmul.f32 %v353, %v465
    %v482 = vmul.f32 %v354, %v466
    %v483 = vmul.f32 %v355, %v467
    %v484 = vmul.f32 %v356, %v468
    %v485 = vmul.f32 %v357, %v469
    %v486 = vmul.f32 %v358, %v470
    %v487 = vmul.f32 %v359, %v471
    %v488 = vmul.f32 %v360, %v472
    %v489 = vmul.f32 %v361, %v473
    %v490 = vmul.f32 %v362, %v474
    %v491 = vmul.f32 %v363, %v475
    %v492 = vmul.f32 %v364, %v476
    %v493 = vmul.f32 %v365, %v477
    %v494 = vmul.f32 %v366, %v478
    %v495 = vpack.c.bf16 %v480, %v479
    %v496 = vpack.c.bf16 %v482, %v481
    %v497 = vpack.c.bf16 %v484, %v483
    %v498 = vpack.c.bf16 %v486, %v485
    %v499 = vpack.c.bf16 %v488, %v487
    %v500 = vpack.c.bf16 %v490, %v489
    %v501 = vpack.c.bf16 %v492, %v491
    %v502 = vpack.c.bf16 %v494, %v493
    %v503 = vld [vmem:[%s3] sm:$0xf]
    %v504 = vld [vmem:[%s3 + $0x4] sm:$0xf]
    %v505 = vld [vmem:[%s3 + $0x8] sm:$0xf]
    %v506 = vld [vmem:[%s3 + $0xc] sm:$0xf]
    %v507 = vld [vmem:[%s3 + $0x10] sm:$0xf]
    %v508 = vld [vmem:[%s3 + $0x14] sm:$0xf]
    %v509 = vld [vmem:[%s3 + $0x18] sm:$0xf]
    %v510 = vld [vmem:[%s3 + $0x1c] sm:$0xf]
    %v511 = vld [vmem:[%s3 + $0x20] sm:$0xf]
    %v512 = vld [vmem:[%s3 + $0x24] sm:$0xf]
    %v513 = vld [vmem:[%s3 + $0x28] sm:$0xf]
    %v514 = vld [vmem:[%s3 + $0x2c] sm:$0xf]
    %v515 = vld [vmem:[%s3 + $0x30] sm:$0xf]
    %v516 = vld [vmem:[%s3 + $0x34] sm:$0xf]
    %v517 = vld [vmem:[%s3 + $0x38] sm:$0xf]
    %v518 = vld [vmem:[%s3 + $0x3c] sm:$0xf]
    %v519 = vld [vmem:[%s4] sm:$0xff]
    %v520 = vld [vmem:[%s4 + $0x8] sm:$0xff]
    %v521 = vld [vmem:[%s4 + $0x10] sm:$0xff]
    %v522 = vld [vmem:[%s4 + $0x18] sm:$0xff]
    %v523 = vld [vmem:[%s4 + $0x20] sm:$0xff]
    %v524 = vld [vmem:[%s4 + $0x28] sm:$0xff]
    %v525 = vld [vmem:[%s4 + $0x30] sm:$0xff]
    %v526 = vld [vmem:[%s4 + $0x38] sm:$0xff]
    %v527 = vld [vmem:[%s4 + $0x40] sm:$0xff]
    %v528 = vld [vmem:[%s4 + $0x48] sm:$0xff]
    %v529 = vld [vmem:[%s4 + $0x50] sm:$0xff]
    %v530 = vld [vmem:[%s4 + $0x58] sm:$0xff]
    %v531 = vld [vmem:[%s4 + $0x60] sm:$0xff]
    %v532 = vld [vmem:[%s4 + $0x68] sm:$0xff]
    %v533 = vld [vmem:[%s4 + $0x70] sm:$0xff]
    %v534 = vld [vmem:[%s4 + $0x78] sm:$0xff]
    %536 = vset.pattern.permute.xlu0 0
    %537 = vperm.xlu0 %536, %v519
    %v538 = vpop.permute.xlu0 %537
    %541 = vset.pattern.permute.xlu0 0
    %542 = vperm.xlu0 %541, %v520
    %v543 = vpop.permute.xlu0 %542
    %546 = vset.pattern.permute.xlu0 0
    %547 = vperm.xlu0 %546, %v521
    %v548 = vpop.permute.xlu0 %547
    %551 = vset.pattern.permute.xlu0 0
    %552 = vperm.xlu0 %551, %v522
    %v553 = vpop.permute.xlu0 %552
    %556 = vset.pattern.permute.xlu0 0
    %557 = vperm.xlu0 %556, %v523
    %v558 = vpop.permute.xlu0 %557
    %561 = vset.pattern.permute.xlu0 0
    %562 = vperm.xlu0 %561, %v524
    %v563 = vpop.permute.xlu0 %562
    %566 = vset.pattern.permute.xlu0 0
    %567 = vperm.xlu0 %566, %v525
    %v568 = vpop.permute.xlu0 %567
    %571 = vset.pattern.permute.xlu0 0
    %572 = vperm.xlu0 %571, %v526
    %v573 = vpop.permute.xlu0 %572
    %576 = vset.pattern.permute.xlu0 0
    %577 = vperm.xlu0 %576, %v527
    %v578 = vpop.permute.xlu0 %577
    %581 = vset.pattern.permute.xlu0 0
    %582 = vperm.xlu0 %581, %v528
    %v583 = vpop.permute.xlu0 %582
    %586 = vset.pattern.permute.xlu0 0
    %587 = vperm.xlu0 %586, %v529
    %v588 = vpop.permute.xlu0 %587
    %591 = vset.pattern.permute.xlu0 0
    %592 = vperm.xlu0 %591, %v530
    %v593 = vpop.permute.xlu0 %592
    %596 = vset.pattern.permute.xlu0 0
    %597 = vperm.xlu0 %596, %v531
    %v598 = vpop.permute.xlu0 %597
    %601 = vset.pattern.permute.xlu0 0
    %602 = vperm.xlu0 %601, %v532
    %v603 = vpop.permute.xlu0 %602
    %606 = vset.pattern.permute.xlu0 0
    %607 = vperm.xlu0 %606, %v533
    %v608 = vpop.permute.xlu0 %607
    %611 = vset.pattern.permute.xlu0 0
    %612 = vperm.xlu0 %611, %v534
    %v613 = vpop.permute.xlu0 %612
    %v631 = vunpack.c.l.b16 %v503
    %v632 = vunpack.c.l.b16 %v504
    %v633 = vunpack.c.l.b16 %v505
    %v634 = vunpack.c.l.b16 %v506
    %v635 = vunpack.c.l.b16 %v507
    %v636 = vunpack.c.l.b16 %v508
    %v637 = vunpack.c.l.b16 %v509
    %v638 = vunpack.c.l.b16 %v510
    %v639 = vunpack.c.l.b16 %v511
    %v640 = vunpack.c.l.b16 %v512
    %v641 = vunpack.c.l.b16 %v513
    %v642 = vunpack.c.l.b16 %v514
    %v643 = vunpack.c.l.b16 %v515
    %v644 = vunpack.c.l.b16 %v516
    %v645 = vunpack.c.l.b16 %v517
    %v646 = vunpack.c.l.b16 %v518
    %v647 = vpack.c.b16 %v632, %v631
    %v648 = vpack.c.b16 %v634, %v633
    %v649 = vpack.c.b16 %v636, %v635
    %v650 = vpack.c.b16 %v638, %v637
    %v651 = vpack.c.b16 %v640, %v639
    %v652 = vpack.c.b16 %v642, %v641
    %v653 = vpack.c.b16 %v644, %v643
    %v654 = vpack.c.b16 %v646, %v645
    %663 = vmatprep.subr.bf16.mxu0 0
    %664 = vmatpush1.bf16.msra.mxu0 %v495
    %665 = vmatprep.subr.bf16.mxu0 0
    %666 = vmatpush1.bf16.msra.mxu0 %v496
    %667 = vmatprep.subr.bf16.mxu0 0
    %668 = vmatpush1.bf16.msra.mxu0 %v497
    %669 = vmatprep.subr.bf16.mxu0 0
    %670 = vmatpush1.bf16.msra.mxu0 %v498
    %671 = vmatprep.subr.bf16.mxu0 0
    %672 = vmatpush1.bf16.msra.mxu0 %v499
    %673 = vmatprep.subr.bf16.mxu0 0
    %674 = vmatpush1.bf16.msra.mxu0 %v500
    %675 = vmatprep.subr.bf16.mxu0 0
    %676 = vmatpush1.bf16.msra.mxu0 %v501
    %677 = vmatprep.subr.bf16.mxu0 0
    %678 = vmatpush1.bf16.msra.mxu0 %v502
    %679 = vmatprep.subr.bf16.mxu0 0
    %680 = vmatpush1.bf16.msra.mxu0 0
    %681 = vmatprep.subr.bf16.mxu0 0
    %682 = vmatpush1.bf16.msra.mxu0 0
    %683 = vmatprep.subr.bf16.mxu0 0
    %684 = vmatpush1.bf16.msra.mxu0 0
    %685 = vmatprep.subr.bf16.mxu0 0
    %686 = vmatpush1.bf16.msra.mxu0 0
    %687 = vmatprep.subr.bf16.mxu0 0
    %688 = vmatpush1.bf16.msra.mxu0 0
    %689 = vmatprep.subr.bf16.mxu0 0
    %690 = vmatpush1.bf16.msra.mxu0 0
    %691 = vmatprep.subr.bf16.mxu0 0
    %692 = vmatpush1.bf16.msra.mxu0 0
    %693 = vmatprep.subr.bf16.mxu0 0
    %694 = vmatpush1.bf16.msra.mxu0 0
    %695 = vmatprep.mubr.bf16.mxu0 0
    %696 = vmatmul.mubr.bf16.gmra.mrb[0].mxu0 %v647
    %v697 = vpop.f32.mrb[0].mxu0
    %v698 = vadd.f32 %v538, %v697
    %v699 = vpop.f32.mrb[0].mxu0
    %v700 = vpop.f32.mrb[0].mxu0
    %v701 = vadd.f32 %v543, %v700
    %v702 = vpop.f32.mrb[0].mxu0
    %703 = vmatprep.mubr.bf16.mxu0 0
    %704 = vmatmul.mubr.bf16.gmra.mrb[0].mxu0 %v648
    %v705 = vpop.f32.mrb[0].mxu0
    %v706 = vadd.f32 %v548, %v705
    %v707 = vpop.f32.mrb[0].mxu0
    %v708 = vpop.f32.mrb[0].mxu0
    %v709 = vadd.f32 %v553, %v708
    %v710 = vpop.f32.mrb[0].mxu0
    %711 = vmatprep.mubr.bf16.mxu0 0
    %712 = vmatmul.mubr.bf16.gmra.mrb[0].mxu0 %v649
    %v713 = vpop.f32.mrb[0].mxu0
    %v714 = vadd.f32 %v558, %v713
    %v715 = vpop.f32.mrb[0].mxu0
    %v716 = vpop.f32.mrb[0].mxu0
    %v717 = vadd.f32 %v563, %v716
    %v718 = vpop.f32.mrb[0].mxu0
    %719 = vmatprep.mubr.bf16.mxu0 0
    %720 = vmatmul.mubr.bf16.gmra.mrb[0].mxu0 %v650
    %v721 = vpop.f32.mrb[0].mxu0
    %v722 = vadd.f32 %v568, %v721
    %v723 = vpop.f32.mrb[0].mxu0
    %v724 = vpop.f32.mrb[0].mxu0
    %v725 = vadd.f32 %v573, %v724
    %v726 = vpop.f32.mrb[0].mxu0
    %727 = vmatprep.mubr.bf16.mxu0 0
    %728 = vmatmul.mubr.bf16.gmra.mrb[0].mxu0 %v651
    %v729 = vpop.f32.mrb[0].mxu0
    %v730 = vadd.f32 %v578, %v729
    %v731 = vpop.f32.mrb[0].mxu0
    %v732 = vpop.f32.mrb[0].mxu0
    %v733 = vadd.f32 %v583, %v732
    %v734 = vpop.f32.mrb[0].mxu0
    %735 = vmatprep.mubr.bf16.mxu0 0
    %736 = vmatmul.mubr.bf16.gmra.mrb[0].mxu0 %v652
    %v737 = vpop.f32.mrb[0].mxu0
    %v738 = vadd.f32 %v588, %v737
    %v739 = vpop.f32.mrb[0].mxu0
    %v740 = vpop.f32.mrb[0].mxu0
    %v741 = vadd.f32 %v593, %v740
    %v742 = vpop.f32.mrb[0].mxu0
    %743 = vmatprep.mubr.bf16.mxu0 0
    %744 = vmatmul.mubr.bf16.gmra.mrb[0].mxu0 %v653
    %v745 = vpop.f32.mrb[0].mxu0
    %v746 = vadd.f32 %v598, %v745
    %v747 = vpop.f32.mrb[0].mxu0
    %v748 = vpop.f32.mrb[0].mxu0
    %v749 = vadd.f32 %v603, %v748
    %v750 = vpop.f32.mrb[0].mxu0
    %751 = vmatprep.mubr.bf16.mxu0 0
    %752 = vmatmul.mubr.bf16.gmra.mrb[0].mxu0 %v654
    %v753 = vpop.f32.mrb[0].mxu0
    %v754 = vadd.f32 %v608, %v753
    %v755 = vpop.f32.mrb[0].mxu0
    %v756 = vpop.f32.mrb[0].mxu0
    %v757 = vadd.f32 %v613, %v756
    %v758 = vpop.f32.mrb[0].mxu0
    %759 = vdwg.mxu0
    %v760 = vmul.f32 %v698, 0.5
    %v761 = vmul.f32 %v701, 0.5
    %v762 = vmul.f32 %v706, 0.5
    %v763 = vmul.f32 %v709, 0.5
    %v764 = vmul.f32 %v714, 0.5
    %v765 = vmul.f32 %v717, 0.5
    %v766 = vmul.f32 %v722, 0.5
    %v767 = vmul.f32 %v725, 0.5
    %v768 = vmul.f32 %v730, 0.5
    %v769 = vmul.f32 %v733, 0.5
    %v770 = vmul.f32 %v738, 0.5
    %v771 = vmul.f32 %v741, 0.5
    %v772 = vmul.f32 %v746, 0.5
    %v773 = vmul.f32 %v749, 0.5
    %v774 = vmul.f32 %v754, 0.5
    %v775 = vmul.f32 %v757, 0.5
    %v776 = vmul.f32 %v698, 0.044715
    %v777 = vmul.f32 %v701, 0.044715
    %v778 = vmul.f32 %v706, 0.044715
    %v779 = vmul.f32 %v709, 0.044715
    %v780 = vmul.f32 %v714, 0.044715
    %v781 = vmul.f32 %v717, 0.044715
    %v782 = vmul.f32 %v722, 0.044715
    %v783 = vmul.f32 %v725, 0.044715
    %v784 = vmul.f32 %v730, 0.044715
    %v785 = vmul.f32 %v733, 0.044715
    %v786 = vmul.f32 %v738, 0.044715
    %v787 = vmul.f32 %v741, 0.044715
    %v788 = vmul.f32 %v746, 0.044715
    %v789 = vmul.f32 %v749, 0.044715
    %v790 = vmul.f32 %v754, 0.044715
    %v791 = vmul.f32 %v757, 0.044715
    %v792 = vmul.f32 %v776, %v698
    %v793 = vmul.f32 %v777, %v701
    %v794 = vmul.f32 %v778, %v706
    %v795 = vmul.f32 %v779, %v709
    %v796 = vmul.f32 %v780, %v714
    %v797 = vmul.f32 %v781, %v717
    %v798 = vmul.f32 %v782, %v722
    %v799 = vmul.f32 %v783, %v725
    %v800 = vmul.f32 %v784, %v730
    %v801 = vmul.f32 %v785, %v733
    %v802 = vmul.f32 %v786, %v738
    %v803 = vmul.f32 %v787, %v741
    %v804 = vmul.f32 %v788, %v746
    %v805 = vmul.f32 %v789, %v749
    %v806 = vmul.f32 %v790, %v754
    %v807 = vmul.f32 %v791, %v757
    %v808 = vmul.f32 %v792, %v698
    %v809 = vmul.f32 %v793, %v701
    %v810 = vmul.f32 %v794, %v706
    %v811 = vmul.f32 %v795, %v709
    %v812 = vmul.f32 %v796, %v714
    %v813 = vmul.f32 %v797, %v717
    %v814 = vmul.f32 %v798, %v722
    %v815 = vmul.f32 %v799, %v725
    %v816 = vmul.f32 %v800, %v730
    %v817 = vmul.f32 %v801, %v733
    %v818 = vmul.f32 %v802, %v738
    %v819 = vmul.f32 %v803, %v741
    %v820 = vmul.f32 %v804, %v746
    %v821 = vmul.f32 %v805, %v749
    %v822 = vmul.f32 %v806, %v754
    %v823 = vmul.f32 %v807, %v757
    %v824 = vadd.f32 %v698, %v808
    %v825 = vadd.f32 %v701, %v809
    %v826 = vadd.f32 %v706, %v810
    %v827 = vadd.f32 %v709, %v811
    %v828 = vadd.f32 %v714, %v812
    %v829 = vadd.f32 %v717, %v813
    %v830 = vadd.f32 %v722, %v814
    %v831 = vadd.f32 %v725, %v815
    %v832 = vadd.f32 %v730, %v816
    %v833 = vadd.f32 %v733, %v817
    %v834 = vadd.f32 %v738, %v818
    %v835 = vadd.f32 %v741, %v819
    %v836 = vadd.f32 %v746, %v820
    %v837 = vadd.f32 %v749, %v821
    %v838 = vadd.f32 %v754, %v822
    %v839 = vadd.f32 %v757, %v823
    %v840 = vmul.f32 %v824, 0.7978846
    %v841 = vmul.f32 %v825, 0.7978846
    %v842 = vmul.f32 %v826, 0.7978846
    %v843 = vmul.f32 %v827, 0.7978846
    %v844 = vmul.f32 %v828, 0.7978846
    %v845 = vmul.f32 %v829, 0.7978846
    %v846 = vmul.f32 %v830, 0.7978846
    %v847 = vmul.f32 %v831, 0.7978846
    %v848 = vmul.f32 %v832, 0.7978846
    %v849 = vmul.f32 %v833, 0.7978846
    %v850 = vmul.f32 %v834, 0.7978846
    %v851 = vmul.f32 %v835, 0.7978846
    %v852 = vmul.f32 %v836, 0.7978846
    %v853 = vmul.f32 %v837, 0.7978846
    %v854 = vmul.f32 %v838, 0.7978846
    %v855 = vmul.f32 %v839, 0.7978846
    %v856 = vtanh.pop %v840
    %v857 = vtanh.pop %v841
    %v858 = vtanh.pop %v842
    %v859 = vtanh.pop %v843
    %v860 = vtanh.pop %v844
    %v861 = vtanh.pop %v845
    %v862 = vtanh.pop %v846
    %v863 = vtanh.pop %v847
    %v864 = vtanh.pop %v848
    %v865 = vtanh.pop %v849
    %v866 = vtanh.pop %v850
    %v867 = vtanh.pop %v851
    %v868 = vtanh.pop %v852
    %v869 = vtanh.pop %v853
    %v870 = vtanh.pop %v854
    %v871 = vtanh.pop %v855
    %v872 = vadd.f32 %v856, 1.0
    %v873 = vadd.f32 %v857, 1.0
    %v874 = vadd.f32 %v858, 1.0
    %v875 = vadd.f32 %v859, 1.0
    %v876 = vadd.f32 %v860, 1.0
    %v877 = vadd.f32 %v861, 1.0
    %v878 = vadd.f32 %v862, 1.0
    %v879 = vadd.f32 %v863, 1.0
    %v880 = vadd.f32 %v864, 1.0
    %v881 = vadd.f32 %v865, 1.0
    %v882 = vadd.f32 %v866, 1.0
    %v883 = vadd.f32 %v867, 1.0
    %v884 = vadd.f32 %v868, 1.0
    %v885 = vadd.f32 %v869, 1.0
    %v886 = vadd.f32 %v870, 1.0
    %v887 = vadd.f32 %v871, 1.0
    %v888 = vmul.f32 %v760, %v872
    %v889 = vmul.f32 %v761, %v873
    %v890 = vmul.f32 %v762, %v874
    %v891 = vmul.f32 %v763, %v875
    %v892 = vmul.f32 %v764, %v876
    %v893 = vmul.f32 %v765, %v877
    %v894 = vmul.f32 %v766, %v878
    %v895 = vmul.f32 %v767, %v879
    %v896 = vmul.f32 %v768, %v880
    %v897 = vmul.f32 %v769, %v881
    %v898 = vmul.f32 %v770, %v882
    %v899 = vmul.f32 %v771, %v883
    %v900 = vmul.f32 %v772, %v884
    %v901 = vmul.f32 %v773, %v885
    %v902 = vmul.f32 %v774, %v886
    %v903 = vmul.f32 %v775, %v887
    %v904 = vld [vmem:[%s5] sm:$0xff]
    %v905 = vld [vmem:[%s5 + $0x8] sm:$0xff]
    %v906 = vld [vmem:[%s5 + $0x10] sm:$0xff]
    %v907 = vld [vmem:[%s5 + $0x18] sm:$0xff]
    %v908 = vld [vmem:[%s5 + $0x20] sm:$0xff]
    %v909 = vld [vmem:[%s5 + $0x28] sm:$0xff]
    %v910 = vld [vmem:[%s5 + $0x30] sm:$0xff]
    %v911 = vld [vmem:[%s5 + $0x38] sm:$0xff]
    %v912 = vld [vmem:[%s5 + $0x40] sm:$0xff]
    %v913 = vld [vmem:[%s5 + $0x48] sm:$0xff]
    %v914 = vld [vmem:[%s5 + $0x50] sm:$0xff]
    %v915 = vld [vmem:[%s5 + $0x58] sm:$0xff]
    %v916 = vld [vmem:[%s5 + $0x60] sm:$0xff]
    %v917 = vld [vmem:[%s5 + $0x68] sm:$0xff]
    %v918 = vld [vmem:[%s5 + $0x70] sm:$0xff]
    %v919 = vld [vmem:[%s5 + $0x78] sm:$0xff]
    %v920 = vld [vmem:[#allocation2] sm:$0x1]
    %922 = vset.pattern.permute.xlu0 0
    %923 = vperm.xlu0 %922, %v904
    %v924 = vpop.permute.xlu0 %923
    %927 = vset.pattern.permute.xlu0 0
    %928 = vperm.xlu0 %927, %v905
    %v929 = vpop.permute.xlu0 %928
    %932 = vset.pattern.permute.xlu0 0
    %933 = vperm.xlu0 %932, %v906
    %v934 = vpop.permute.xlu0 %933
    %937 = vset.pattern.permute.xlu0 0
    %938 = vperm.xlu0 %937, %v907
    %v939 = vpop.permute.xlu0 %938
    %942 = vset.pattern.permute.xlu0 0
    %943 = vperm.xlu0 %942, %v908
    %v944 = vpop.permute.xlu0 %943
    %947 = vset.pattern.permute.xlu0 0
    %948 = vperm.xlu0 %947, %v909
    %v949 = vpop.permute.xlu0 %948
    %952 = vset.pattern.permute.xlu0 0
    %953 = vperm.xlu0 %952, %v910
    %v954 = vpop.permute.xlu0 %953
    %957 = vset.pattern.permute.xlu0 0
    %958 = vperm.xlu0 %957, %v911
    %v959 = vpop.permute.xlu0 %958
    %962 = vset.pattern.permute.xlu0 0
    %963 = vperm.xlu0 %962, %v912
    %v964 = vpop.permute.xlu0 %963
    %967 = vset.pattern.permute.xlu0 0
    %968 = vperm.xlu0 %967, %v913
    %v969 = vpop.permute.xlu0 %968
    %972 = vset.pattern.permute.xlu0 0
    %973 = vperm.xlu0 %972, %v914
    %v974 = vpop.permute.xlu0 %973
    %977 = vset.pattern.permute.xlu0 0
    %978 = vperm.xlu0 %977, %v915
    %v979 = vpop.permute.xlu0 %978
    %982 = vset.pattern.permute.xlu0 0
    %983 = vperm.xlu0 %982, %v916
    %v984 = vpop.permute.xlu0 %983
    %987 = vset.pattern.permute.xlu0 0
    %988 = vperm.xlu0 %987, %v917
    %v989 = vpop.permute.xlu0 %988
    %992 = vset.pattern.permute.xlu0 0
    %993 = vperm.xlu0 %992, %v918
    %v994 = vpop.permute.xlu0 %993
    %997 = vset.pattern.permute.xlu0 0
    %998 = vperm.xlu0 %997, %v919
    %v999 = vpop.permute.xlu0 %998
    %v1001 = vmul.f32 %v888, %v924
    %v1002 = vmul.f32 %v889, %v929
    %v1003 = vmul.f32 %v890, %v934
    %v1004 = vmul.f32 %v891, %v939
    %v1005 = vmul.f32 %v892, %v944
    %v1006 = vmul.f32 %v893, %v949
    %v1007 = vmul.f32 %v894, %v954
    %v1008 = vmul.f32 %v895, %v959
    %v1009 = vmul.f32 %v896, %v964
    %v1010 = vmul.f32 %v897, %v969
    %v1011 = vmul.f32 %v898, %v974
    %v1012 = vmul.f32 %v899, %v979
    %v1013 = vmul.f32 %v900, %v984
    %v1014 = vmul.f32 %v901, %v989
    %v1015 = vmul.f32 %v902, %v994
    %v1016 = vmul.f32 %v903, %v999
    %v1017 = vadd.f32 %v1001, %v1002
    %v1018 = vadd.f32 %v1017, %v1003
    %v1019 = vadd.f32 %v1018, %v1004
    %v1020 = vadd.f32 %v1019, %v1005
    %v1021 = vadd.f32 %v1020, %v1006
    %v1022 = vadd.f32 %v1021, %v1007
    %v1023 = vadd.f32 %v1022, %v1008
    %v1024 = vadd.f32 %v1023, %v1009
    %v1025 = vadd.f32 %v1024, %v1010
    %v1026 = vadd.f32 %v1025, %v1011
    %v1027 = vadd.f32 %v1026, %v1012
    %v1028 = vadd.f32 %v1027, %v1013
    %v1029 = vadd.f32 %v1028, %v1014
    %v1030 = vadd.f32 %v1029, %v1015
    %v1031 = vadd.f32 %v1030, %v1016
    %v1032 = vrot.slane %v1031, 4
    %v1033 = vadd.f32 %v1031, %v1032
    %v1034 = vrot.slane %v1033, 2
    %v1035 = vadd.f32 %v1033, %v1034
    %v1036 = vrot.slane %v1035, 1
    %v1037 = vadd.f32 %v1035, %v1036
    %1039 = vset.pattern.permute.xlu0 0
    %1040 = vperm.xlu0 %1039, %v920
    %v1041 = vpop.permute.xlu0 %1040
    %v1043 = vlaneseq
    %v1044 = vshrl.u32 %v1043, 7
    %v1045 = vsub.s32 0, %v1044
    %v1046 = vrot.slane %v1041, %v1045
    %v1047 = vadd.f32 %v1037, %v1046
    %1048 = vst [vmem:[#allocation3] sm:$0x1] %v1047
    // Predicated region
    $region30: #{tpu_custom_call.1} parent=1 // pred_check
      _
    $region31: #{tpu_custom_call.1} parent=1 // pred_check_branch
      %1050 = sbr.rel (0) target = $region33
    $region32: #{tpu_custom_call.1} parent=1 // pred_region
      %s1052 = ssub.s32 16, 16
      %1053 = vsyncadd [#allocation4], %s1052
      %s1055 = sshll.u32 [#allocation3], 4
      %s1056 = int_to_ptr.vmem [resolvable:$true] %s1055
      %1058 = dma.vmem_to_hbm [thread:$0]  %s1056, 16, %s7, [#allocation4]
    $region33: #{tpu_custom_call.1} parent=1 // pred_fallthru
      _
    // Predicated region
    $region34: #{tpu_custom_call.1} parent=1 // pred_check
      _
    $region35: #{tpu_custom_call.1} parent=1 // pred_check_branch
      %1060 = sbr.rel (0) target = $region37
    $region36: #{tpu_custom_call.1} parent=1 // pred_region
      %1061 = dma.done [#allocation4], 16
    $region37: #{tpu_custom_call.1} parent=1 // pred_fallthru
      _
    %1062 = vsyncpa [#allocation4], 1

</llo_original>
